<compile_context>
chip_gen: v6e
topology: v6e:2x2x1
jax: 0.10.0
libtpu: 0.0.40
codegen_flags: <defaults>
</compile_context>

<pallas_src>
import functools
import math

import jax
import jax.numpy as jnp
from jax import lax
from jax.experimental import pallas as pl
from jax.experimental.pallas import tpu as pltpu

# ----------------------------- configuration -----------------------------
B = 2            # batch
S = 8            # sequence length
NUM_TOKENS = 64  # vocabulary (module default 257; kept small, embedding is wrapper glue)
NUM_CLASSES = 132
C_PAD = 256      # class dim zero-padded to a multiple of 128 (lane-dense output)
D_MODEL = 64
NHEAD = 4
NUM_LAYERS = 2   # module default 4; kept small
DIM_FF = 128     # module default 2048; kept small
LN_EPS = 1e-5


# ------------------------------- kernel ----------------------------------
def _layer_norm(x, g, b, eps):
    mu = jnp.mean(x, axis=-1, keepdims=True)
    var = jnp.mean((x - mu) ** 2, axis=-1, keepdims=True)
    return (x - mu) * lax.rsqrt(var + eps) * g + b


def chess_encoder_kernel(
    x_ref, mask_ref,
    wqkv_ref, bqkv_ref, wo_ref, bo_ref,
    ln1g_ref, ln1b_ref,
    w1_ref, b1_ref, w2_ref, b2_ref,
    ln2g_ref, ln2b_ref,
    wh_ref, bh_ref,
    out_ref,
    *, nhead, eps,
):
    x = x_ref[...]            # (B*S, D) f32 activations
    mask = mask_ref[...]      # (B*S, B*S) additive mask: block-diag batches + key padding
    n, d = x.shape
    num_layers = wqkv_ref.shape[0]
    head_dim = d // nhead
    cdt = jnp.bfloat16        # MXU-native compute dtype (f32 accumulation)

    for l in range(num_layers):
        # per-layer weights loaded once (bf16) / biases & LN params (f32)
        wqkv_l = wqkv_ref[l]
        wo_l = wo_ref[l]
        w1_l = w1_ref[l]
        w2_l = w2_ref[l]

        # ---- multi-head self-attention over all B*S rows at once ----
        qkv = jnp.dot(x.astype(cdt), wqkv_l,
                      preferred_element_type=jnp.float32) + bqkv_ref[l]   # (N, 3D)
        qkv_b = qkv.astype(cdt)

        attn = jnp.zeros((n, d), jnp.float32)
        for h in range(nhead):
            q_lo = 0 * d + h * head_dim
            k_lo = 1 * d + h * head_dim
            v_lo = 2 * d + h * head_dim
            qh = qkv_b[:, q_lo:q_lo + head_dim]
            kh = qkv_b[:, k_lo:k_lo + head_dim]
            vh = qkv_b[:, v_lo:v_lo + head_dim]

            # 1/sqrt(head_dim) already folded into the Q weights/bias (init time).
            scores = lax.dot_general(
                qh, kh, (((1,), (1,)), ((), ())),
                preferred_element_type=jnp.float32) + mask                # (N, N)
            scores = scores - jnp.max(scores, axis=-1, keepdims=True)
            p = jnp.exp(scores)
            p = p * pl.reciprocal(jnp.sum(p, axis=-1, keepdims=True), approx=True)
            head_out = jnp.dot(p.astype(cdt), vh,
                               preferred_element_type=jnp.float32)        # (N, hd)
            # fold output projection per head -> no lane-dim concat needed
            attn = attn + jnp.dot(head_out.astype(cdt),
                                  wo_l[h * head_dim:(h + 1) * head_dim, :],
                                  preferred_element_type=jnp.float32)
        attn = attn + bo_ref[l]

        x = _layer_norm(x + attn, ln1g_ref[l], ln1b_ref[l], eps)

        # ---- feed-forward (ReLU) ----
        hdn = jnp.dot(x.astype(cdt), w1_l,
                      preferred_element_type=jnp.float32) + b1_ref[l]
        hdn = jnp.maximum(hdn, 0.0)
        ffn = jnp.dot(hdn.astype(cdt), w2_l,
                      preferred_element_type=jnp.float32) + b2_ref[l]

        x = _layer_norm(x + ffn, ln2g_ref[l], ln2b_ref[l], eps)

    # ---- classification head on all rows (one MXU pass, lane-dense store) ----
    logits = jnp.dot(x.astype(cdt), wh_ref[...],
                     preferred_element_type=jnp.float32) + bh_ref[...]    # (N, C_PAD)
    out_ref[...] = logits


# ------------------------------- wrapper ----------------------------------
def init_params(key):
    ks = jax.random.split(key, 12)
    d, f, l, c, v = D_MODEL, DIM_FF, NUM_LAYERS, NUM_CLASSES, NUM_TOKENS
    hd = d // NHEAD
    wdt = jnp.bfloat16

    # nn.Embedding(1 + num_tokens, d, padding_idx=-1): padding_idx normalizes to
    # index num_tokens (the last of the 1+num_tokens rows), which is the zero row.
    emb = 0.02 * jax.random.normal(ks[0], (v + 1, d), jnp.float32)
    emb = emb.at[v].set(0.0)

    # QKV projection; fold the attention scale 1/sqrt(head_dim) into the Q part
    # once at init so the kernel skips the per-head scalar multiply of scores.
    wqkv = 0.05 * jax.random.normal(ks[1], (l, d, 3 * d), jnp.float32)
    bqkv = 0.05 * jax.random.normal(ks[2], (l, 1, 3 * d), jnp.float32)
    scale = 1.0 / math.sqrt(hd)
    wqkv = wqkv.at[:, :, :d].multiply(scale)
    bqkv = bqkv.at[:, :, :d].multiply(scale)

    p = dict(
        embedding=emb,
        wqkv=wqkv.astype(wdt),
        bqkv=bqkv,
        wo=(0.05 * jax.random.normal(ks[3], (l, d, d), jnp.float32)).astype(wdt),
        bo=0.05 * jax.random.normal(ks[4], (l, 1, d), jnp.float32),
        ln1g=jnp.ones((l, 1, d), jnp.float32),
        ln1b=jnp.zeros((l, 1, d), jnp.float32),
        w1=(0.05 * jax.random.normal(ks[5], (l, d, f), jnp.float32)).astype(wdt),
        b1=0.05 * jax.random.normal(ks[6], (l, 1, f), jnp.float32),
        w2=(0.05 * jax.random.normal(ks[7], (l, f, d), jnp.float32)).astype(wdt),
        b2=0.05 * jax.random.normal(ks[8], (l, 1, d), jnp.float32),
        ln2g=jnp.ones((l, 1, d), jnp.float32),
        ln2b=jnp.zeros((l, 1, d), jnp.float32),
        # head: zero-pad class dim c -> C_PAD for lane-dense (unmasked) stores
        wh=jnp.pad(0.05 * jax.random.normal(ks[9], (d, c), jnp.float32),
                   ((0, 0), (0, C_PAD - c))).astype(wdt),
        bh=jnp.pad(0.05 * jax.random.normal(ks[10], (1, c), jnp.float32),
                   ((0, 0), (0, C_PAD - c))),
    )
    return p


@jax.jit
def chess_model_forward(sequence_tokens, squares_tokens, params):
    d, c, v = D_MODEL, NUM_CLASSES, NUM_TOKENS
    b, s = sequence_tokens.shape

    # --- glue: embedding gather + padding mask (plain JAX) ---
    def embed(tok):
        idx = jnp.where(tok < 0, v, tok)   # -1 -> padding row (index v), zeroed
        return jnp.take(params["embedding"], idx, axis=0)

    x = (embed(sequence_tokens) + embed(squares_tokens)).reshape(b * s, d)

    # Additive attention mask over the flattened (B*S) key axis:
    # block-diagonal over batches + key-padding. -1e9 (not -inf) keeps the
    # all-masked row case finite (deliberate difference from PyTorch's NaNs).
    pad = (sequence_tokens == -1).reshape(b * s)
    bid = jnp.repeat(jnp.arange(b), s)
    allowed = (bid[:, None] == bid[None, :]) & (~pad)[None, :]
    mask = jnp.where(allowed, 0.0, -1e9).astype(jnp.float32)    # (B*S, B*S)

    kernel = functools.partial(chess_encoder_kernel, nhead=NHEAD, eps=LN_EPS)

    vmem = pl.BlockSpec(memory_space=pltpu.MemorySpace.VMEM)
    out = pl.pallas_call(
        kernel,
        out_shape=jax.ShapeDtypeStruct((b * s, C_PAD), jnp.float32),
        in_specs=[vmem] * 16,
        out_specs=vmem,
    )(
        x.astype(jnp.float32), mask,
        params["wqkv"], params["bqkv"], params["wo"], params["bo"],
        params["ln1g"], params["ln1b"],
        params["w1"], params["b1"], params["w2"], params["b2"],
        params["ln2g"], params["ln2b"],
        params["wh"], params["bh"],
    )
    # token 0 of each sequence, un-pad the class dim back to num_classes
    return out.reshape(b, s, C_PAD)[:, 0, :c]


# --------------------------------- main ------------------------------------
if __name__ == "__main__":
    key = jax.random.PRNGKey(0)
    kp, ks1, ks2 = jax.random.split(key, 3)

    params = init_params(kp)

    sequence_tokens = jax.random.randint(ks1, (B, S), 0, NUM_TOKENS, jnp.int32)
    # introduce some padding (-1) to exercise the key-padding mask
    sequence_tokens = sequence_tokens.at[1, -2:].set(-1)
    squares_tokens = jax.random.randint(ks2, (B, S), 0, NUM_TOKENS, jnp.int32)

    logits = chess_model_forward(sequence_tokens, squares_tokens, params)
    jax.block_until_ready(logits)
    assert logits.shape == (B, NUM_CLASSES)
    assert bool(jnp.all(jnp.isfinite(logits)))
    print("KERNEL_OK")
</pallas_src>

<mosaic_0001>
module attributes {stable_mosaic.version = 11 : i64} {
  func.func @chess_encoder_kernel(%arg0: memref<16x64xf32, #tpu.memory_space<vmem>>, %arg1: memref<16x16xf32, #tpu.memory_space<vmem>>, %arg2: memref<2x64x192xbf16, #tpu.memory_space<vmem>>, %arg3: memref<2x1x192xf32, #tpu.memory_space<vmem>>, %arg4: memref<2x64x64xbf16, #tpu.memory_space<vmem>>, %arg5: memref<2x1x64xf32, #tpu.memory_space<vmem>>, %arg6: memref<2x1x64xf32, #tpu.memory_space<vmem>>, %arg7: memref<2x1x64xf32, #tpu.memory_space<vmem>>, %arg8: memref<2x64x128xbf16, #tpu.memory_space<vmem>>, %arg9: memref<2x1x128xf32, #tpu.memory_space<vmem>>, %arg10: memref<2x128x64xbf16, #tpu.memory_space<vmem>>, %arg11: memref<2x1x64xf32, #tpu.memory_space<vmem>>, %arg12: memref<2x1x64xf32, #tpu.memory_space<vmem>>, %arg13: memref<2x1x64xf32, #tpu.memory_space<vmem>>, %arg14: memref<64x256xbf16, #tpu.memory_space<vmem>>, %arg15: memref<1x256xf32, #tpu.memory_space<vmem>>, %arg16: memref<16x256xf32, #tpu.memory_space<vmem>>) attributes {dimension_semantics = [], scalar_prefetch = 0 : i64, scratch_operands = 0 : i64, tpu.core_type = #tpu.core_type<tc>} {
    %c0 = arith.constant 0 : index
    %c0_0 = arith.constant 0 : index
    %0 = vector.load %arg0[%c0, %c0_0] : memref<16x64xf32, #tpu.memory_space<vmem>>, vector<16x64xf32>
    %c0_1 = arith.constant 0 : index
    %c0_2 = arith.constant 0 : index
    %1 = vector.load %arg1[%c0_1, %c0_2] : memref<16x16xf32, #tpu.memory_space<vmem>>, vector<16x16xf32>
    %c0_3 = arith.constant 0 : index
    %c0_4 = arith.constant 0 : index
    %c0_5 = arith.constant 0 : index
    %2 = vector.load %arg2[%c0_3, %c0_4, %c0_5] : memref<2x64x192xbf16, #tpu.memory_space<vmem>>, vector<1x64x192xbf16>
    %3 = vector.shape_cast %2 : vector<1x64x192xbf16> to vector<64x192xbf16>
    %c0_6 = arith.constant 0 : index
    %c0_7 = arith.constant 0 : index
    %c0_8 = arith.constant 0 : index
    %4 = vector.load %arg4[%c0_6, %c0_7, %c0_8] : memref<2x64x64xbf16, #tpu.memory_space<vmem>>, vector<1x64x64xbf16>
    %5 = vector.shape_cast %4 : vector<1x64x64xbf16> to vector<64x64xbf16>
    %c0_9 = arith.constant 0 : index
    %c0_10 = arith.constant 0 : index
    %c0_11 = arith.constant 0 : index
    %6 = vector.load %arg8[%c0_9, %c0_10, %c0_11] : memref<2x64x128xbf16, #tpu.memory_space<vmem>>, vector<1x64x128xbf16>
    %7 = vector.shape_cast %6 : vector<1x64x128xbf16> to vector<64x128xbf16>
    %c0_12 = arith.constant 0 : index
    %c0_13 = arith.constant 0 : index
    %c0_14 = arith.constant 0 : index
    %8 = vector.load %arg10[%c0_12, %c0_13, %c0_14] : memref<2x128x64xbf16, #tpu.memory_space<vmem>>, vector<1x128x64xbf16>
    %9 = vector.shape_cast %8 : vector<1x128x64xbf16> to vector<128x64xbf16>
    %10 = arith.truncf %0 : vector<16x64xf32> to vector<16x64xbf16>
    %cst = arith.constant dense<0.000000e+00> : vector<16x192xf32>
    %11 = tpu.matmul %10, %3, %cst {dimension_numbers = #tpu.dot_dimension_numbers<[1], [0], [0], [1], [0, 0, 1, 1], [], []>} : vector<16x64xbf16>, vector<64x192xbf16>, vector<16x192xf32> -> vector<16x192xf32>
    %c0_15 = arith.constant 0 : index
    %c0_16 = arith.constant 0 : index
    %c0_17 = arith.constant 0 : index
    %12 = vector.load %arg3[%c0_15, %c0_16, %c0_17] : memref<2x1x192xf32, #tpu.memory_space<vmem>>, vector<1x1x192xf32>
    %13 = vector.shape_cast %12 : vector<1x1x192xf32> to vector<1x192xf32>
    %14 = vector.broadcast %13 : vector<1x192xf32> to vector<16x192xf32>
    %15 = arith.addf %11, %14 : vector<16x192xf32>
    %16 = arith.truncf %15 : vector<16x192xf32> to vector<16x192xbf16>
    %cst_18 = arith.constant 0.000000e+00 : f32
    %17 = vector.broadcast %cst_18 : f32 to vector<16x64xf32>
    %18 = vector.extract_strided_slice %16 {offsets = [0, 0], sizes = [16, 16], strides = [1, 1]} : vector<16x192xbf16> to vector<16x16xbf16>
    %19 = vector.extract_strided_slice %16 {offsets = [0, 64], sizes = [16, 16], strides = [1, 1]} : vector<16x192xbf16> to vector<16x16xbf16>
    %20 = vector.extract_strided_slice %16 {offsets = [0, 128], sizes = [16, 16], strides = [1, 1]} : vector<16x192xbf16> to vector<16x16xbf16>
    %cst_19 = arith.constant dense<0.000000e+00> : vector<16x16xf32>
    %21 = tpu.matmul %18, %19, %cst_19 {dimension_numbers = #tpu.dot_dimension_numbers<[1], [1], [0], [0], [0, 0, 1, 0], [], []>} : vector<16x16xbf16>, vector<16x16xbf16>, vector<16x16xf32> -> vector<16x16xf32>
    %22 = arith.addf %21, %1 : vector<16x16xf32>
    %cst_20 = arith.constant dense<0xFF800000> : vector<16xf32>
    %23 = vector.multi_reduction <maximumf>, %22, %cst_20 [1] : vector<16x16xf32> to vector<16xf32>
    %24 = vector.shape_cast %23 : vector<16xf32> to vector<16x1xf32>
    %25 = vector.broadcast %24 : vector<16x1xf32> to vector<16x16xf32>
    %26 = arith.subf %22, %25 : vector<16x16xf32>
    %27 = math.exp %26 : vector<16x16xf32>
    %cst_21 = arith.constant dense<0.000000e+00> : vector<16xf32>
    %28 = vector.multi_reduction <add>, %27, %cst_21 [1] : vector<16x16xf32> to vector<16xf32>
    %29 = vector.shape_cast %28 : vector<16xf32> to vector<16x1xf32>
    %30 = tpu.reciprocal %29 {approx = true} : vector<16x1xf32> -> vector<16x1xf32>
    %31 = vector.broadcast %30 : vector<16x1xf32> to vector<16x16xf32>
    %32 = arith.mulf %27, %31 : vector<16x16xf32>
    %33 = arith.truncf %32 : vector<16x16xf32> to vector<16x16xbf16>
    %cst_22 = arith.constant dense<0.000000e+00> : vector<16x16xf32>
    %34 = tpu.matmul %33, %20, %cst_22 {dimension_numbers = #tpu.dot_dimension_numbers<[1], [0], [0], [1], [0, 0, 1, 1], [], []>} : vector<16x16xbf16>, vector<16x16xbf16>, vector<16x16xf32> -> vector<16x16xf32>
    %35 = arith.truncf %34 : vector<16x16xf32> to vector<16x16xbf16>
    %36 = vector.extract_strided_slice %5 {offsets = [0, 0], sizes = [16, 64], strides = [1, 1]} : vector<64x64xbf16> to vector<16x64xbf16>
    %cst_23 = arith.constant dense<0.000000e+00> : vector<16x64xf32>
    %37 = tpu.matmul %35, %36, %cst_23 {dimension_numbers = #tpu.dot_dimension_numbers<[1], [0], [0], [1], [0, 0, 1, 1], [], []>} : vector<16x16xbf16>, vector<16x64xbf16>, vector<16x64xf32> -> vector<16x64xf32>
    %38 = arith.addf %17, %37 : vector<16x64xf32>
    %39 = vector.extract_strided_slice %16 {offsets = [0, 16], sizes = [16, 16], strides = [1, 1]} : vector<16x192xbf16> to vector<16x16xbf16>
    %40 = vector.extract_strided_slice %16 {offsets = [0, 80], sizes = [16, 16], strides = [1, 1]} : vector<16x192xbf16> to vector<16x16xbf16>
    %41 = vector.extract_strided_slice %16 {offsets = [0, 144], sizes = [16, 16], strides = [1, 1]} : vector<16x192xbf16> to vector<16x16xbf16>
    %cst_24 = arith.constant dense<0.000000e+00> : vector<16x16xf32>
    %42 = tpu.matmul %39, %40, %cst_24 {dimension_numbers = #tpu.dot_dimension_numbers<[1], [1], [0], [0], [0, 0, 1, 0], [], []>} : vector<16x16xbf16>, vector<16x16xbf16>, vector<16x16xf32> -> vector<16x16xf32>
    %43 = arith.addf %42, %1 : vector<16x16xf32>
    %cst_25 = arith.constant dense<0xFF800000> : vector<16xf32>
    %44 = vector.multi_reduction <maximumf>, %43, %cst_25 [1] : vector<16x16xf32> to vector<16xf32>
    %45 = vector.shape_cast %44 : vector<16xf32> to vector<16x1xf32>
    %46 = vector.broadcast %45 : vector<16x1xf32> to vector<16x16xf32>
    %47 = arith.subf %43, %46 : vector<16x16xf32>
    %48 = math.exp %47 : vector<16x16xf32>
    %cst_26 = arith.constant dense<0.000000e+00> : vector<16xf32>
    %49 = vector.multi_reduction <add>, %48, %cst_26 [1] : vector<16x16xf32> to vector<16xf32>
    %50 = vector.shape_cast %49 : vector<16xf32> to vector<16x1xf32>
    %51 = tpu.reciprocal %50 {approx = true} : vector<16x1xf32> -> vector<16x1xf32>
    %52 = vector.broadcast %51 : vector<16x1xf32> to vector<16x16xf32>
    %53 = arith.mulf %48, %52 : vector<16x16xf32>
    %54 = arith.truncf %53 : vector<16x16xf32> to vector<16x16xbf16>
    %cst_27 = arith.constant dense<0.000000e+00> : vector<16x16xf32>
    %55 = tpu.matmul %54, %41, %cst_27 {dimension_numbers = #tpu.dot_dimension_numbers<[1], [0], [0], [1], [0, 0, 1, 1], [], []>} : vector<16x16xbf16>, vector<16x16xbf16>, vector<16x16xf32> -> vector<16x16xf32>
    %56 = arith.truncf %55 : vector<16x16xf32> to vector<16x16xbf16>
    %57 = vector.extract_strided_slice %5 {offsets = [16, 0], sizes = [16, 64], strides = [1, 1]} : vector<64x64xbf16> to vector<16x64xbf16>
    %cst_28 = arith.constant dense<0.000000e+00> : vector<16x64xf32>
    %58 = tpu.matmul %56, %57, %cst_28 {dimension_numbers = #tpu.dot_dimension_numbers<[1], [0], [0], [1], [0, 0, 1, 1], [], []>} : vector<16x16xbf16>, vector<16x64xbf16>, vector<16x64xf32> -> vector<16x64xf32>
    %59 = arith.addf %38, %58 : vector<16x64xf32>
    %60 = vector.extract_strided_slice %16 {offsets = [0, 32], sizes = [16, 16], strides = [1, 1]} : vector<16x192xbf16> to vector<16x16xbf16>
    %61 = vector.extract_strided_slice %16 {offsets = [0, 96], sizes = [16, 16], strides = [1, 1]} : vector<16x192xbf16> to vector<16x16xbf16>
    %62 = vector.extract_strided_slice %16 {offsets = [0, 160], sizes = [16, 16], strides = [1, 1]} : vector<16x192xbf16> to vector<16x16xbf16>
    %cst_29 = arith.constant dense<0.000000e+00> : vector<16x16xf32>
    %63 = tpu.matmul %60, %61, %cst_29 {dimension_numbers = #tpu.dot_dimension_numbers<[1], [1], [0], [0], [0, 0, 1, 0], [], []>} : vector<16x16xbf16>, vector<16x16xbf16>, vector<16x16xf32> -> vector<16x16xf32>
    %64 = arith.addf %63, %1 : vector<16x16xf32>
    %cst_30 = arith.constant dense<0xFF800000> : vector<16xf32>
    %65 = vector.multi_reduction <maximumf>, %64, %cst_30 [1] : vector<16x16xf32> to vector<16xf32>
    %66 = vector.shape_cast %65 : vector<16xf32> to vector<16x1xf32>
    %67 = vector.broadcast %66 : vector<16x1xf32> to vector<16x16xf32>
    %68 = arith.subf %64, %67 : vector<16x16xf32>
    %69 = math.exp %68 : vector<16x16xf32>
    %cst_31 = arith.constant dense<0.000000e+00> : vector<16xf32>
    %70 = vector.multi_reduction <add>, %69, %cst_31 [1] : vector<16x16xf32> to vector<16xf32>
    %71 = vector.shape_cast %70 : vector<16xf32> to vector<16x1xf32>
    %72 = tpu.reciprocal %71 {approx = true} : vector<16x1xf32> -> vector<16x1xf32>
    %73 = vector.broadcast %72 : vector<16x1xf32> to vector<16x16xf32>
    %74 = arith.mulf %69, %73 : vector<16x16xf32>
    %75 = arith.truncf %74 : vector<16x16xf32> to vector<16x16xbf16>
    %cst_32 = arith.constant dense<0.000000e+00> : vector<16x16xf32>
    %76 = tpu.matmul %75, %62, %cst_32 {dimension_numbers = #tpu.dot_dimension_numbers<[1], [0], [0], [1], [0, 0, 1, 1], [], []>} : vector<16x16xbf16>, vector<16x16xbf16>, vector<16x16xf32> -> vector<16x16xf32>
    %77 = arith.truncf %76 : vector<16x16xf32> to vector<16x16xbf16>
    %78 = vector.extract_strided_slice %5 {offsets = [32, 0], sizes = [16, 64], strides = [1, 1]} : vector<64x64xbf16> to vector<16x64xbf16>
    %cst_33 = arith.constant dense<0.000000e+00> : vector<16x64xf32>
    %79 = tpu.matmul %77, %78, %cst_33 {dimension_numbers = #tpu.dot_dimension_numbers<[1], [0], [0], [1], [0, 0, 1, 1], [], []>} : vector<16x16xbf16>, vector<16x64xbf16>, vector<16x64xf32> -> vector<16x64xf32>
    %80 = arith.addf %59, %79 : vector<16x64xf32>
    %81 = vector.extract_strided_slice %16 {offsets = [0, 48], sizes = [16, 16], strides = [1, 1]} : vector<16x192xbf16> to vector<16x16xbf16>
    %82 = vector.extract_strided_slice %16 {offsets = [0, 112], sizes = [16, 16], strides = [1, 1]} : vector<16x192xbf16> to vector<16x16xbf16>
    %83 = vector.extract_strided_slice %16 {offsets = [0, 176], sizes = [16, 16], strides = [1, 1]} : vector<16x192xbf16> to vector<16x16xbf16>
    %cst_34 = arith.constant dense<0.000000e+00> : vector<16x16xf32>
    %84 = tpu.matmul %81, %82, %cst_34 {dimension_numbers = #tpu.dot_dimension_numbers<[1], [1], [0], [0], [0, 0, 1, 0], [], []>} : vector<16x16xbf16>, vector<16x16xbf16>, vector<16x16xf32> -> vector<16x16xf32>
    %85 = arith.addf %84, %1 : vector<16x16xf32>
    %cst_35 = arith.constant dense<0xFF800000> : vector<16xf32>
    %86 = vector.multi_reduction <maximumf>, %85, %cst_35 [1] : vector<16x16xf32> to vector<16xf32>
    %87 = vector.shape_cast %86 : vector<16xf32> to vector<16x1xf32>
    %88 = vector.broadcast %87 : vector<16x1xf32> to vector<16x16xf32>
    %89 = arith.subf %85, %88 : vector<16x16xf32>
    %90 = math.exp %89 : vector<16x16xf32>
    %cst_36 = arith.constant dense<0.000000e+00> : vector<16xf32>
    %91 = vector.multi_reduction <add>, %90, %cst_36 [1] : vector<16x16xf32> to vector<16xf32>
    %92 = vector.shape_cast %91 : vector<16xf32> to vector<16x1xf32>
    %93 = tpu.reciprocal %92 {approx = true} : vector<16x1xf32> -> vector<16x1xf32>
    %94 = vector.broadcast %93 : vector<16x1xf32> to vector<16x16xf32>
    %95 = arith.mulf %90, %94 : vector<16x16xf32>
    %96 = arith.truncf %95 : vector<16x16xf32> to vector<16x16xbf16>
    %cst_37 = arith.constant dense<0.000000e+00> : vector<16x16xf32>
    %97 = tpu.matmul %96, %83, %cst_37 {dimension_numbers = #tpu.dot_dimension_numbers<[1], [0], [0], [1], [0, 0, 1, 1], [], []>} : vector<16x16xbf16>, vector<16x16xbf16>, vector<16x16xf32> -> vector<16x16xf32>
    %98 = arith.truncf %97 : vector<16x16xf32> to vector<16x16xbf16>
    %99 = vector.extract_strided_slice %5 {offsets = [48, 0], sizes = [16, 64], strides = [1, 1]} : vector<64x64xbf16> to vector<16x64xbf16>
    %cst_38 = arith.constant dense<0.000000e+00> : vector<16x64xf32>
    %100 = tpu.matmul %98, %99, %cst_38 {dimension_numbers = #tpu.dot_dimension_numbers<[1], [0], [0], [1], [0, 0, 1, 1], [], []>} : vector<16x16xbf16>, vector<16x64xbf16>, vector<16x64xf32> -> vector<16x64xf32>
    %101 = arith.addf %80, %100 : vector<16x64xf32>
    %c0_39 = arith.constant 0 : index
    %c0_40 = arith.constant 0 : index
    %c0_41 = arith.constant 0 : index
    %102 = vector.load %arg5[%c0_39, %c0_40, %c0_41] : memref<2x1x64xf32, #tpu.memory_space<vmem>>, vector<1x1x64xf32>
    %103 = vector.shape_cast %102 : vector<1x1x64xf32> to vector<1x64xf32>
    %104 = vector.broadcast %103 : vector<1x64xf32> to vector<16x64xf32>
    %105 = arith.addf %101, %104 : vector<16x64xf32>
    %106 = arith.addf %0, %105 : vector<16x64xf32>
    %c0_42 = arith.constant 0 : index
    %c0_43 = arith.constant 0 : index
    %c0_44 = arith.constant 0 : index
    %107 = vector.load %arg6[%c0_42, %c0_43, %c0_44] : memref<2x1x64xf32, #tpu.memory_space<vmem>>, vector<1x1x64xf32>
    %108 = vector.shape_cast %107 : vector<1x1x64xf32> to vector<1x64xf32>
    %c0_45 = arith.constant 0 : index
    %c0_46 = arith.constant 0 : index
    %c0_47 = arith.constant 0 : index
    %109 = vector.load %arg7[%c0_45, %c0_46, %c0_47] : memref<2x1x64xf32, #tpu.memory_space<vmem>>, vector<1x1x64xf32>
    %110 = vector.shape_cast %109 : vector<1x1x64xf32> to vector<1x64xf32>
    %cst_48 = arith.constant dense<0.000000e+00> : vector<16xf32>
    %111 = vector.multi_reduction <add>, %106, %cst_48 [1] : vector<16x64xf32> to vector<16xf32>
    %112 = vector.shape_cast %111 : vector<16xf32> to vector<16x1xf32>
    %cst_49 = arith.constant 6.400000e+01 : f32
    %113 = vector.broadcast %cst_49 : f32 to vector<16x1xf32>
    %114 = arith.divf %112, %113 : vector<16x1xf32>
    %115 = vector.broadcast %114 : vector<16x1xf32> to vector<16x64xf32>
    %116 = arith.subf %106, %115 : vector<16x64xf32>
    %117 = arith.mulf %116, %116 : vector<16x64xf32>
    %cst_50 = arith.constant dense<0.000000e+00> : vector<16xf32>
    %118 = vector.multi_reduction <add>, %117, %cst_50 [1] : vector<16x64xf32> to vector<16xf32>
    %119 = vector.shape_cast %118 : vector<16xf32> to vector<16x1xf32>
    %cst_51 = arith.constant 6.400000e+01 : f32
    %120 = vector.broadcast %cst_51 : f32 to vector<16x1xf32>
    %121 = arith.divf %119, %120 : vector<16x1xf32>
    %122 = vector.broadcast %114 : vector<16x1xf32> to vector<16x64xf32>
    %123 = arith.subf %106, %122 : vector<16x64xf32>
    %cst_52 = arith.constant 9.99999974E-6 : f32
    %124 = vector.broadcast %cst_52 : f32 to vector<16x1xf32>
    %125 = arith.addf %121, %124 : vector<16x1xf32>
    %126 = math.rsqrt %125 : vector<16x1xf32>
    %127 = vector.broadcast %126 : vector<16x1xf32> to vector<16x64xf32>
    %128 = arith.mulf %123, %127 : vector<16x64xf32>
    %129 = vector.broadcast %108 : vector<1x64xf32> to vector<16x64xf32>
    %130 = arith.mulf %128, %129 : vector<16x64xf32>
    %131 = vector.broadcast %110 : vector<1x64xf32> to vector<16x64xf32>
    %132 = arith.addf %130, %131 : vector<16x64xf32>
    %133 = arith.truncf %132 : vector<16x64xf32> to vector<16x64xbf16>
    %cst_53 = arith.constant dense<0.000000e+00> : vector<16x128xf32>
    %134 = tpu.matmul %133, %7, %cst_53 {dimension_numbers = #tpu.dot_dimension_numbers<[1], [0], [0], [1], [0, 0, 1, 1], [], []>} : vector<16x64xbf16>, vector<64x128xbf16>, vector<16x128xf32> -> vector<16x128xf32>
    %c0_54 = arith.constant 0 : index
    %c0_55 = arith.constant 0 : index
    %c0_56 = arith.constant 0 : index
    %135 = vector.load %arg9[%c0_54, %c0_55, %c0_56] : memref<2x1x128xf32, #tpu.memory_space<vmem>>, vector<1x1x128xf32>
    %136 = vector.shape_cast %135 : vector<1x1x128xf32> to vector<1x128xf32>
    %137 = vector.broadcast %136 : vector<1x128xf32> to vector<16x128xf32>
    %138 = arith.addf %134, %137 : vector<16x128xf32>
    %cst_57 = arith.constant 0.000000e+00 : f32
    %139 = vector.broadcast %cst_57 : f32 to vector<16x128xf32>
    %140 = arith.maximumf %138, %139 : vector<16x128xf32>
    %141 = arith.truncf %140 : vector<16x128xf32> to vector<16x128xbf16>
    %cst_58 = arith.constant dense<0.000000e+00> : vector<16x64xf32>
    %142 = tpu.matmul %141, %9, %cst_58 {dimension_numbers = #tpu.dot_dimension_numbers<[1], [0], [0], [1], [0, 0, 1, 1], [], []>} : vector<16x128xbf16>, vector<128x64xbf16>, vector<16x64xf32> -> vector<16x64xf32>
    %c0_59 = arith.constant 0 : index
    %c0_60 = arith.constant 0 : index
    %c0_61 = arith.constant 0 : index
    %143 = vector.load %arg11[%c0_59, %c0_60, %c0_61] : memref<2x1x64xf32, #tpu.memory_space<vmem>>, vector<1x1x64xf32>
    %144 = vector.shape_cast %143 : vector<1x1x64xf32> to vector<1x64xf32>
    %145 = vector.broadcast %144 : vector<1x64xf32> to vector<16x64xf32>
    %146 = arith.addf %142, %145 : vector<16x64xf32>
    %147 = arith.addf %132, %146 : vector<16x64xf32>
    %c0_62 = arith.constant 0 : index
    %c0_63 = arith.constant 0 : index
    %c0_64 = arith.constant 0 : index
    %148 = vector.load %arg12[%c0_62, %c0_63, %c0_64] : memref<2x1x64xf32, #tpu.memory_space<vmem>>, vector<1x1x64xf32>
    %149 = vector.shape_cast %148 : vector<1x1x64xf32> to vector<1x64xf32>
    %c0_65 = arith.constant 0 : index
    %c0_66 = arith.constant 0 : index
    %c0_67 = arith.constant 0 : index
    %150 = vector.load %arg13[%c0_65, %c0_66, %c0_67] : memref<2x1x64xf32, #tpu.memory_space<vmem>>, vector<1x1x64xf32>
    %151 = vector.shape_cast %150 : vector<1x1x64xf32> to vector<1x64xf32>
    %cst_68 = arith.constant dense<0.000000e+00> : vector<16xf32>
    %152 = vector.multi_reduction <add>, %147, %cst_68 [1] : vector<16x64xf32> to vector<16xf32>
    %153 = vector.shape_cast %152 : vector<16xf32> to vector<16x1xf32>
    %cst_69 = arith.constant 6.400000e+01 : f32
    %154 = vector.broadcast %cst_69 : f32 to vector<16x1xf32>
    %155 = arith.divf %153, %154 : vector<16x1xf32>
    %156 = vector.broadcast %155 : vector<16x1xf32> to vector<16x64xf32>
    %157 = arith.subf %147, %156 : vector<16x64xf32>
    %158 = arith.mulf %157, %157 : vector<16x64xf32>
    %cst_70 = arith.constant dense<0.000000e+00> : vector<16xf32>
    %159 = vector.multi_reduction <add>, %158, %cst_70 [1] : vector<16x64xf32> to vector<16xf32>
    %160 = vector.shape_cast %159 : vector<16xf32> to vector<16x1xf32>
    %cst_71 = arith.constant 6.400000e+01 : f32
    %161 = vector.broadcast %cst_71 : f32 to vector<16x1xf32>
    %162 = arith.divf %160, %161 : vector<16x1xf32>
    %163 = vector.broadcast %155 : vector<16x1xf32> to vector<16x64xf32>
    %164 = arith.subf %147, %163 : vector<16x64xf32>
    %cst_72 = arith.constant 9.99999974E-6 : f32
    %165 = vector.broadcast %cst_72 : f32 to vector<16x1xf32>
    %166 = arith.addf %162, %165 : vector<16x1xf32>
    %167 = math.rsqrt %166 : vector<16x1xf32>
    %168 = vector.broadcast %167 : vector<16x1xf32> to vector<16x64xf32>
    %169 = arith.mulf %164, %168 : vector<16x64xf32>
    %170 = vector.broadcast %149 : vector<1x64xf32> to vector<16x64xf32>
    %171 = arith.mulf %169, %170 : vector<16x64xf32>
    %172 = vector.broadcast %151 : vector<1x64xf32> to vector<16x64xf32>
    %173 = arith.addf %171, %172 : vector<16x64xf32>
    %c1 = arith.constant 1 : index
    %c0_73 = arith.constant 0 : index
    %c0_74 = arith.constant 0 : index
    %174 = vector.load %arg2[%c1, %c0_73, %c0_74] : memref<2x64x192xbf16, #tpu.memory_space<vmem>>, vector<1x64x192xbf16>
    %175 = vector.shape_cast %174 : vector<1x64x192xbf16> to vector<64x192xbf16>
    %c1_75 = arith.constant 1 : index
    %c0_76 = arith.constant 0 : index
    %c0_77 = arith.constant 0 : index
    %176 = vector.load %arg4[%c1_75, %c0_76, %c0_77] : memref<2x64x64xbf16, #tpu.memory_space<vmem>>, vector<1x64x64xbf16>
    %177 = vector.shape_cast %176 : vector<1x64x64xbf16> to vector<64x64xbf16>
    %c1_78 = arith.constant 1 : index
    %c0_79 = arith.constant 0 : index
    %c0_80 = arith.constant 0 : index
    %178 = vector.load %arg8[%c1_78, %c0_79, %c0_80] : memref<2x64x128xbf16, #tpu.memory_space<vmem>>, vector<1x64x128xbf16>
    %179 = vector.shape_cast %178 : vector<1x64x128xbf16> to vector<64x128xbf16>
    %c1_81 = arith.constant 1 : index
    %c0_82 = arith.constant 0 : index
    %c0_83 = arith.constant 0 : index
    %180 = vector.load %arg10[%c1_81, %c0_82, %c0_83] : memref<2x128x64xbf16, #tpu.memory_space<vmem>>, vector<1x128x64xbf16>
    %181 = vector.shape_cast %180 : vector<1x128x64xbf16> to vector<128x64xbf16>
    %182 = arith.truncf %173 : vector<16x64xf32> to vector<16x64xbf16>
    %cst_84 = arith.constant dense<0.000000e+00> : vector<16x192xf32>
    %183 = tpu.matmul %182, %175, %cst_84 {dimension_numbers = #tpu.dot_dimension_numbers<[1], [0], [0], [1], [0, 0, 1, 1], [], []>} : vector<16x64xbf16>, vector<64x192xbf16>, vector<16x192xf32> -> vector<16x192xf32>
    %c1_85 = arith.constant 1 : index
    %c0_86 = arith.constant 0 : index
    %c0_87 = arith.constant 0 : index
    %184 = vector.load %arg3[%c1_85, %c0_86, %c0_87] : memref<2x1x192xf32, #tpu.memory_space<vmem>>, vector<1x1x192xf32>
    %185 = vector.shape_cast %184 : vector<1x1x192xf32> to vector<1x192xf32>
    %186 = vector.broadcast %185 : vector<1x192xf32> to vector<16x192xf32>
    %187 = arith.addf %183, %186 : vector<16x192xf32>
    %188 = arith.truncf %187 : vector<16x192xf32> to vector<16x192xbf16>
    %cst_88 = arith.constant 0.000000e+00 : f32
    %189 = vector.broadcast %cst_88 : f32 to vector<16x64xf32>
    %190 = vector.extract_strided_slice %188 {offsets = [0, 0], sizes = [16, 16], strides = [1, 1]} : vector<16x192xbf16> to vector<16x16xbf16>
    %191 = vector.extract_strided_slice %188 {offsets = [0, 64], sizes = [16, 16], strides = [1, 1]} : vector<16x192xbf16> to vector<16x16xbf16>
    %192 = vector.extract_strided_slice %188 {offsets = [0, 128], sizes = [16, 16], strides = [1, 1]} : vector<16x192xbf16> to vector<16x16xbf16>
    %cst_89 = arith.constant dense<0.000000e+00> : vector<16x16xf32>
    %193 = tpu.matmul %190, %191, %cst_89 {dimension_numbers = #tpu.dot_dimension_numbers<[1], [1], [0], [0], [0, 0, 1, 0], [], []>} : vector<16x16xbf16>, vector<16x16xbf16>, vector<16x16xf32> -> vector<16x16xf32>
    %194 = arith.addf %193, %1 : vector<16x16xf32>
    %cst_90 = arith.constant dense<0xFF800000> : vector<16xf32>
    %195 = vector.multi_reduction <maximumf>, %194, %cst_90 [1] : vector<16x16xf32> to vector<16xf32>
    %196 = vector.shape_cast %195 : vector<16xf32> to vector<16x1xf32>
    %197 = vector.broadcast %196 : vector<16x1xf32> to vector<16x16xf32>
    %198 = arith.subf %194, %197 : vector<16x16xf32>
    %199 = math.exp %198 : vector<16x16xf32>
    %cst_91 = arith.constant dense<0.000000e+00> : vector<16xf32>
    %200 = vector.multi_reduction <add>, %199, %cst_91 [1] : vector<16x16xf32> to vector<16xf32>
    %201 = vector.shape_cast %200 : vector<16xf32> to vector<16x1xf32>
    %202 = tpu.reciprocal %201 {approx = true} : vector<16x1xf32> -> vector<16x1xf32>
    %203 = vector.broadcast %202 : vector<16x1xf32> to vector<16x16xf32>
    %204 = arith.mulf %199, %203 : vector<16x16xf32>
    %205 = arith.truncf %204 : vector<16x16xf32> to vector<16x16xbf16>
    %cst_92 = arith.constant dense<0.000000e+00> : vector<16x16xf32>
    %206 = tpu.matmul %205, %192, %cst_92 {dimension_numbers = #tpu.dot_dimension_numbers<[1], [0], [0], [1], [0, 0, 1, 1], [], []>} : vector<16x16xbf16>, vector<16x16xbf16>, vector<16x16xf32> -> vector<16x16xf32>
    %207 = arith.truncf %206 : vector<16x16xf32> to vector<16x16xbf16>
    %208 = vector.extract_strided_slice %177 {offsets = [0, 0], sizes = [16, 64], strides = [1, 1]} : vector<64x64xbf16> to vector<16x64xbf16>
    %cst_93 = arith.constant dense<0.000000e+00> : vector<16x64xf32>
    %209 = tpu.matmul %207, %208, %cst_93 {dimension_numbers = #tpu.dot_dimension_numbers<[1], [0], [0], [1], [0, 0, 1, 1], [], []>} : vector<16x16xbf16>, vector<16x64xbf16>, vector<16x64xf32> -> vector<16x64xf32>
    %210 = arith.addf %189, %209 : vector<16x64xf32>
    %211 = vector.extract_strided_slice %188 {offsets = [0, 16], sizes = [16, 16], strides = [1, 1]} : vector<16x192xbf16> to vector<16x16xbf16>
    %212 = vector.extract_strided_slice %188 {offsets = [0, 80], sizes = [16, 16], strides = [1, 1]} : vector<16x192xbf16> to vector<16x16xbf16>
    %213 = vector.extract_strided_slice %188 {offsets = [0, 144], sizes = [16, 16], strides = [1, 1]} : vector<16x192xbf16> to vector<16x16xbf16>
    %cst_94 = arith.constant dense<0.000000e+00> : vector<16x16xf32>
    %214 = tpu.matmul %211, %212, %cst_94 {dimension_numbers = #tpu.dot_dimension_numbers<[1], [1], [0], [0], [0, 0, 1, 0], [], []>} : vector<16x16xbf16>, vector<16x16xbf16>, vector<16x16xf32> -> vector<16x16xf32>
    %215 = arith.addf %214, %1 : vector<16x16xf32>
    %cst_95 = arith.constant dense<0xFF800000> : vector<16xf32>
    %216 = vector.multi_reduction <maximumf>, %215, %cst_95 [1] : vector<16x16xf32> to vector<16xf32>
    %217 = vector.shape_cast %216 : vector<16xf32> to vector<16x1xf32>
    %218 = vector.broadcast %217 : vector<16x1xf32> to vector<16x16xf32>
    %219 = arith.subf %215, %218 : vector<16x16xf32>
    %220 = math.exp %219 : vector<16x16xf32>
    %cst_96 = arith.constant dense<0.000000e+00> : vector<16xf32>
    %221 = vector.multi_reduction <add>, %220, %cst_96 [1] : vector<16x16xf32> to vector<16xf32>
    %222 = vector.shape_cast %221 : vector<16xf32> to vector<16x1xf32>
    %223 = tpu.reciprocal %222 {approx = true} : vector<16x1xf32> -> vector<16x1xf32>
    %224 = vector.broadcast %223 : vector<16x1xf32> to vector<16x16xf32>
    %225 = arith.mulf %220, %224 : vector<16x16xf32>
    %226 = arith.truncf %225 : vector<16x16xf32> to vector<16x16xbf16>
    %cst_97 = arith.constant dense<0.000000e+00> : vector<16x16xf32>
    %227 = tpu.matmul %226, %213, %cst_97 {dimension_numbers = #tpu.dot_dimension_numbers<[1], [0], [0], [1], [0, 0, 1, 1], [], []>} : vector<16x16xbf16>, vector<16x16xbf16>, vector<16x16xf32> -> vector<16x16xf32>
    %228 = arith.truncf %227 : vector<16x16xf32> to vector<16x16xbf16>
    %229 = vector.extract_strided_slice %177 {offsets = [16, 0], sizes = [16, 64], strides = [1, 1]} : vector<64x64xbf16> to vector<16x64xbf16>
    %cst_98 = arith.constant dense<0.000000e+00> : vector<16x64xf32>
    %230 = tpu.matmul %228, %229, %cst_98 {dimension_numbers = #tpu.dot_dimension_numbers<[1], [0], [0], [1], [0, 0, 1, 1], [], []>} : vector<16x16xbf16>, vector<16x64xbf16>, vector<16x64xf32> -> vector<16x64xf32>
    %231 = arith.addf %210, %230 : vector<16x64xf32>
    %232 = vector.extract_strided_slice %188 {offsets = [0, 32], sizes = [16, 16], strides = [1, 1]} : vector<16x192xbf16> to vector<16x16xbf16>
    %233 = vector.extract_strided_slice %188 {offsets = [0, 96], sizes = [16, 16], strides = [1, 1]} : vector<16x192xbf16> to vector<16x16xbf16>
    %234 = vector.extract_strided_slice %188 {offsets = [0, 160], sizes = [16, 16], strides = [1, 1]} : vector<16x192xbf16> to vector<16x16xbf16>
    %cst_99 = arith.constant dense<0.000000e+00> : vector<16x16xf32>
    %235 = tpu.matmul %232, %233, %cst_99 {dimension_numbers = #tpu.dot_dimension_numbers<[1], [1], [0], [0], [0, 0, 1, 0], [], []>} : vector<16x16xbf16>, vector<16x16xbf16>, vector<16x16xf32> -> vector<16x16xf32>
    %236 = arith.addf %235, %1 : vector<16x16xf32>
    %cst_100 = arith.constant dense<0xFF800000> : vector<16xf32>
    %237 = vector.multi_reduction <maximumf>, %236, %cst_100 [1] : vector<16x16xf32> to vector<16xf32>
    %238 = vector.shape_cast %237 : vector<16xf32> to vector<16x1xf32>
    %239 = vector.broadcast %238 : vector<16x1xf32> to vector<16x16xf32>
    %240 = arith.subf %236, %239 : vector<16x16xf32>
    %241 = math.exp %240 : vector<16x16xf32>
    %cst_101 = arith.constant dense<0.000000e+00> : vector<16xf32>
    %242 = vector.multi_reduction <add>, %241, %cst_101 [1] : vector<16x16xf32> to vector<16xf32>
    %243 = vector.shape_cast %242 : vector<16xf32> to vector<16x1xf32>
    %244 = tpu.reciprocal %243 {approx = true} : vector<16x1xf32> -> vector<16x1xf32>
    %245 = vector.broadcast %244 : vector<16x1xf32> to vector<16x16xf32>
    %246 = arith.mulf %241, %245 : vector<16x16xf32>
    %247 = arith.truncf %246 : vector<16x16xf32> to vector<16x16xbf16>
    %cst_102 = arith.constant dense<0.000000e+00> : vector<16x16xf32>
    %248 = tpu.matmul %247, %234, %cst_102 {dimension_numbers = #tpu.dot_dimension_numbers<[1], [0], [0], [1], [0, 0, 1, 1], [], []>} : vector<16x16xbf16>, vector<16x16xbf16>, vector<16x16xf32> -> vector<16x16xf32>
    %249 = arith.truncf %248 : vector<16x16xf32> to vector<16x16xbf16>
    %250 = vector.extract_strided_slice %177 {offsets = [32, 0], sizes = [16, 64], strides = [1, 1]} : vector<64x64xbf16> to vector<16x64xbf16>
    %cst_103 = arith.constant dense<0.000000e+00> : vector<16x64xf32>
    %251 = tpu.matmul %249, %250, %cst_103 {dimension_numbers = #tpu.dot_dimension_numbers<[1], [0], [0], [1], [0, 0, 1, 1], [], []>} : vector<16x16xbf16>, vector<16x64xbf16>, vector<16x64xf32> -> vector<16x64xf32>
    %252 = arith.addf %231, %251 : vector<16x64xf32>
    %253 = vector.extract_strided_slice %188 {offsets = [0, 48], sizes = [16, 16], strides = [1, 1]} : vector<16x192xbf16> to vector<16x16xbf16>
    %254 = vector.extract_strided_slice %188 {offsets = [0, 112], sizes = [16, 16], strides = [1, 1]} : vector<16x192xbf16> to vector<16x16xbf16>
    %255 = vector.extract_strided_slice %188 {offsets = [0, 176], sizes = [16, 16], strides = [1, 1]} : vector<16x192xbf16> to vector<16x16xbf16>
    %cst_104 = arith.constant dense<0.000000e+00> : vector<16x16xf32>
    %256 = tpu.matmul %253, %254, %cst_104 {dimension_numbers = #tpu.dot_dimension_numbers<[1], [1], [0], [0], [0, 0, 1, 0], [], []>} : vector<16x16xbf16>, vector<16x16xbf16>, vector<16x16xf32> -> vector<16x16xf32>
    %257 = arith.addf %256, %1 : vector<16x16xf32>
    %cst_105 = arith.constant dense<0xFF800000> : vector<16xf32>
    %258 = vector.multi_reduction <maximumf>, %257, %cst_105 [1] : vector<16x16xf32> to vector<16xf32>
    %259 = vector.shape_cast %258 : vector<16xf32> to vector<16x1xf32>
    %260 = vector.broadcast %259 : vector<16x1xf32> to vector<16x16xf32>
    %261 = arith.subf %257, %260 : vector<16x16xf32>
    %262 = math.exp %261 : vector<16x16xf32>
    %cst_106 = arith.constant dense<0.000000e+00> : vector<16xf32>
    %263 = vector.multi_reduction <add>, %262, %cst_106 [1] : vector<16x16xf32> to vector<16xf32>
    %264 = vector.shape_cast %263 : vector<16xf32> to vector<16x1xf32>
    %265 = tpu.reciprocal %264 {approx = true} : vector<16x1xf32> -> vector<16x1xf32>
    %266 = vector.broadcast %265 : vector<16x1xf32> to vector<16x16xf32>
    %267 = arith.mulf %262, %266 : vector<16x16xf32>
    %268 = arith.truncf %267 : vector<16x16xf32> to vector<16x16xbf16>
    %cst_107 = arith.constant dense<0.000000e+00> : vector<16x16xf32>
    %269 = tpu.matmul %268, %255, %cst_107 {dimension_numbers = #tpu.dot_dimension_numbers<[1], [0], [0], [1], [0, 0, 1, 1], [], []>} : vector<16x16xbf16>, vector<16x16xbf16>, vector<16x16xf32> -> vector<16x16xf32>
    %270 = arith.truncf %269 : vector<16x16xf32> to vector<16x16xbf16>
    %271 = vector.extract_strided_slice %177 {offsets = [48, 0], sizes = [16, 64], strides = [1, 1]} : vector<64x64xbf16> to vector<16x64xbf16>
    %cst_108 = arith.constant dense<0.000000e+00> : vector<16x64xf32>
    %272 = tpu.matmul %270, %271, %cst_108 {dimension_numbers = #tpu.dot_dimension_numbers<[1], [0], [0], [1], [0, 0, 1, 1], [], []>} : vector<16x16xbf16>, vector<16x64xbf16>, vector<16x64xf32> -> vector<16x64xf32>
    %273 = arith.addf %252, %272 : vector<16x64xf32>
    %c1_109 = arith.constant 1 : index
    %c0_110 = arith.constant 0 : index
    %c0_111 = arith.constant 0 : index
    %274 = vector.load %arg5[%c1_109, %c0_110, %c0_111] : memref<2x1x64xf32, #tpu.memory_space<vmem>>, vector<1x1x64xf32>
    %275 = vector.shape_cast %274 : vector<1x1x64xf32> to vector<1x64xf32>
    %276 = vector.broadcast %275 : vector<1x64xf32> to vector<16x64xf32>
    %277 = arith.addf %273, %276 : vector<16x64xf32>
    %278 = arith.addf %173, %277 : vector<16x64xf32>
    %c1_112 = arith.constant 1 : index
    %c0_113 = arith.constant 0 : index
    %c0_114 = arith.constant 0 : index
    %279 = vector.load %arg6[%c1_112, %c0_113, %c0_114] : memref<2x1x64xf32, #tpu.memory_space<vmem>>, vector<1x1x64xf32>
    %280 = vector.shape_cast %279 : vector<1x1x64xf32> to vector<1x64xf32>
    %c1_115 = arith.constant 1 : index
    %c0_116 = arith.constant 0 : index
    %c0_117 = arith.constant 0 : index
    %281 = vector.load %arg7[%c1_115, %c0_116, %c0_117] : memref<2x1x64xf32, #tpu.memory_space<vmem>>, vector<1x1x64xf32>
    %282 = vector.shape_cast %281 : vector<1x1x64xf32> to vector<1x64xf32>
    %cst_118 = arith.constant dense<0.000000e+00> : vector<16xf32>
    %283 = vector.multi_reduction <add>, %278, %cst_118 [1] : vector<16x64xf32> to vector<16xf32>
    %284 = vector.shape_cast %283 : vector<16xf32> to vector<16x1xf32>
    %cst_119 = arith.constant 6.400000e+01 : f32
    %285 = vector.broadcast %cst_119 : f32 to vector<16x1xf32>
    %286 = arith.divf %284, %285 : vector<16x1xf32>
    %287 = vector.broadcast %286 : vector<16x1xf32> to vector<16x64xf32>
    %288 = arith.subf %278, %287 : vector<16x64xf32>
    %289 = arith.mulf %288, %288 : vector<16x64xf32>
    %cst_120 = arith.constant dense<0.000000e+00> : vector<16xf32>
    %290 = vector.multi_reduction <add>, %289, %cst_120 [1] : vector<16x64xf32> to vector<16xf32>
    %291 = vector.shape_cast %290 : vector<16xf32> to vector<16x1xf32>
    %cst_121 = arith.constant 6.400000e+01 : f32
    %292 = vector.broadcast %cst_121 : f32 to vector<16x1xf32>
    %293 = arith.divf %291, %292 : vector<16x1xf32>
    %294 = vector.broadcast %286 : vector<16x1xf32> to vector<16x64xf32>
    %295 = arith.subf %278, %294 : vector<16x64xf32>
    %cst_122 = arith.constant 9.99999974E-6 : f32
    %296 = vector.broadcast %cst_122 : f32 to vector<16x1xf32>
    %297 = arith.addf %293, %296 : vector<16x1xf32>
    %298 = math.rsqrt %297 : vector<16x1xf32>
    %299 = vector.broadcast %298 : vector<16x1xf32> to vector<16x64xf32>
    %300 = arith.mulf %295, %299 : vector<16x64xf32>
    %301 = vector.broadcast %280 : vector<1x64xf32> to vector<16x64xf32>
    %302 = arith.mulf %300, %301 : vector<16x64xf32>
    %303 = vector.broadcast %282 : vector<1x64xf32> to vector<16x64xf32>
    %304 = arith.addf %302, %303 : vector<16x64xf32>
    %305 = arith.truncf %304 : vector<16x64xf32> to vector<16x64xbf16>
    %cst_123 = arith.constant dense<0.000000e+00> : vector<16x128xf32>
    %306 = tpu.matmul %305, %179, %cst_123 {dimension_numbers = #tpu.dot_dimension_numbers<[1], [0], [0], [1], [0, 0, 1, 1], [], []>} : vector<16x64xbf16>, vector<64x128xbf16>, vector<16x128xf32> -> vector<16x128xf32>
    %c1_124 = arith.constant 1 : index
    %c0_125 = arith.constant 0 : index
    %c0_126 = arith.constant 0 : index
    %307 = vector.load %arg9[%c1_124, %c0_125, %c0_126] : memref<2x1x128xf32, #tpu.memory_space<vmem>>, vector<1x1x128xf32>
    %308 = vector.shape_cast %307 : vector<1x1x128xf32> to vector<1x128xf32>
    %309 = vector.broadcast %308 : vector<1x128xf32> to vector<16x128xf32>
    %310 = arith.addf %306, %309 : vector<16x128xf32>
    %cst_127 = arith.constant 0.000000e+00 : f32
    %311 = vector.broadcast %cst_127 : f32 to vector<16x128xf32>
    %312 = arith.maximumf %310, %311 : vector<16x128xf32>
    %313 = arith.truncf %312 : vector<16x128xf32> to vector<16x128xbf16>
    %cst_128 = arith.constant dense<0.000000e+00> : vector<16x64xf32>
    %314 = tpu.matmul %313, %181, %cst_128 {dimension_numbers = #tpu.dot_dimension_numbers<[1], [0], [0], [1], [0, 0, 1, 1], [], []>} : vector<16x128xbf16>, vector<128x64xbf16>, vector<16x64xf32> -> vector<16x64xf32>
    %c1_129 = arith.constant 1 : index
    %c0_130 = arith.constant 0 : index
    %c0_131 = arith.constant 0 : index
    %315 = vector.load %arg11[%c1_129, %c0_130, %c0_131] : memref<2x1x64xf32, #tpu.memory_space<vmem>>, vector<1x1x64xf32>
    %316 = vector.shape_cast %315 : vector<1x1x64xf32> to vector<1x64xf32>
    %317 = vector.broadcast %316 : vector<1x64xf32> to vector<16x64xf32>
    %318 = arith.addf %314, %317 : vector<16x64xf32>
    %319 = arith.addf %304, %318 : vector<16x64xf32>
    %c1_132 = arith.constant 1 : index
    %c0_133 = arith.constant 0 : index
    %c0_134 = arith.constant 0 : index
    %320 = vector.load %arg12[%c1_132, %c0_133, %c0_134] : memref<2x1x64xf32, #tpu.memory_space<vmem>>, vector<1x1x64xf32>
    %321 = vector.shape_cast %320 : vector<1x1x64xf32> to vector<1x64xf32>
    %c1_135 = arith.constant 1 : index
    %c0_136 = arith.constant 0 : index
    %c0_137 = arith.constant 0 : index
    %322 = vector.load %arg13[%c1_135, %c0_136, %c0_137] : memref<2x1x64xf32, #tpu.memory_space<vmem>>, vector<1x1x64xf32>
    %323 = vector.shape_cast %322 : vector<1x1x64xf32> to vector<1x64xf32>
    %cst_138 = arith.constant dense<0.000000e+00> : vector<16xf32>
    %324 = vector.multi_reduction <add>, %319, %cst_138 [1] : vector<16x64xf32> to vector<16xf32>
    %325 = vector.shape_cast %324 : vector<16xf32> to vector<16x1xf32>
    %cst_139 = arith.constant 6.400000e+01 : f32
    %326 = vector.broadcast %cst_139 : f32 to vector<16x1xf32>
    %327 = arith.divf %325, %326 : vector<16x1xf32>
    %328 = vector.broadcast %327 : vector<16x1xf32> to vector<16x64xf32>
    %329 = arith.subf %319, %328 : vector<16x64xf32>
    %330 = arith.mulf %329, %329 : vector<16x64xf32>
    %cst_140 = arith.constant dense<0.000000e+00> : vector<16xf32>
    %331 = vector.multi_reduction <add>, %330, %cst_140 [1] : vector<16x64xf32> to vector<16xf32>
    %332 = vector.shape_cast %331 : vector<16xf32> to vector<16x1xf32>
    %cst_141 = arith.constant 6.400000e+01 : f32
    %333 = vector.broadcast %cst_141 : f32 to vector<16x1xf32>
    %334 = arith.divf %332, %333 : vector<16x1xf32>
    %335 = vector.broadcast %327 : vector<16x1xf32> to vector<16x64xf32>
    %336 = arith.subf %319, %335 : vector<16x64xf32>
    %cst_142 = arith.constant 9.99999974E-6 : f32
    %337 = vector.broadcast %cst_142 : f32 to vector<16x1xf32>
    %338 = arith.addf %334, %337 : vector<16x1xf32>
    %339 = math.rsqrt %338 : vector<16x1xf32>
    %340 = vector.broadcast %339 : vector<16x1xf32> to vector<16x64xf32>
    %341 = arith.mulf %336, %340 : vector<16x64xf32>
    %342 = vector.broadcast %321 : vector<1x64xf32> to vector<16x64xf32>
    %343 = arith.mulf %341, %342 : vector<16x64xf32>
    %344 = vector.broadcast %323 : vector<1x64xf32> to vector<16x64xf32>
    %345 = arith.addf %343, %344 : vector<16x64xf32>
    %346 = arith.truncf %345 : vector<16x64xf32> to vector<16x64xbf16>
    %c0_143 = arith.constant 0 : index
    %c0_144 = arith.constant 0 : index
    %347 = vector.load %arg14[%c0_143, %c0_144] : memref<64x256xbf16, #tpu.memory_space<vmem>>, vector<64x256xbf16>
    %cst_145 = arith.constant dense<0.000000e+00> : vector<16x256xf32>
    %348 = tpu.matmul %346, %347, %cst_145 {dimension_numbers = #tpu.dot_dimension_numbers<[1], [0], [0], [1], [0, 0, 1, 1], [], []>} : vector<16x64xbf16>, vector<64x256xbf16>, vector<16x256xf32> -> vector<16x256xf32>
    %c0_146 = arith.constant 0 : index
    %c0_147 = arith.constant 0 : index
    %349 = vector.load %arg15[%c0_146, %c0_147] : memref<1x256xf32, #tpu.memory_space<vmem>>, vector<1x256xf32>
    %350 = vector.broadcast %349 : vector<1x256xf32> to vector<16x256xf32>
    %351 = arith.addf %348, %350 : vector<16x256xf32>
    %c0_148 = arith.constant 0 : index
    %c0_149 = arith.constant 0 : index
    %352 = vector.load %arg16[%c0_148, %c0_149] : memref<16x256xf32, #tpu.memory_space<vmem>>, vector<16x256xf32>
    tpu.vector_store %arg16[%c0_148, %c0_149], %351 {strides = array<i32>} : memref<16x256xf32, #tpu.memory_space<vmem>>, vector<16x256xf32>,
    return
  }
}

</mosaic_0001>

<llo_original>
// kernel: chess_model_forward.1
$region0: #{chess_model_forward.1}
  #allocation0 [shape = 'u32[]', space=smem, size = 0x4, offset = 0x4, fixed_abs, tag = 'smem constant byte address 0x4 - core index']
  #allocation1 [shape = 'u32[144,128]{1,0:T(1,128)}', space=vmem, size = 0x12000, scoped, tag = 'internal scratch']
  %s0 = inlined_call_operand.vmem [shape: f32[16,64], index: 0, kind: input, shape index: {}]
  %s1 = inlined_call_operand.vmem [shape: f32[16,16], index: 1, kind: input, shape index: {}]
  %s2 = inlined_call_operand.vmem [shape: bf16[2,64,192], index: 2, kind: input, shape index: {}]
  %s3 = inlined_call_operand.vmem [shape: f32[2,1,192], index: 3, kind: input, shape index: {}]
  %s4 = inlined_call_operand.vmem [shape: bf16[2,64,64], index: 4, kind: input, shape index: {}]
  %s5 = inlined_call_operand.vmem [shape: f32[2,1,64], index: 5, kind: input, shape index: {}]
  %s6 = inlined_call_operand.vmem [shape: f32[2,1,64], index: 6, kind: input, shape index: {}]
  %s7 = inlined_call_operand.vmem [shape: f32[2,1,64], index: 7, kind: input, shape index: {}]
  %s8 = inlined_call_operand.vmem [shape: bf16[2,64,128], index: 8, kind: input, shape index: {}]
  %s9 = inlined_call_operand.vmem [shape: f32[2,1,128], index: 9, kind: input, shape index: {}]
  %s10 = inlined_call_operand.vmem [shape: bf16[2,128,64], index: 10, kind: input, shape index: {}]
  %s11 = inlined_call_operand.vmem [shape: f32[2,1,64], index: 11, kind: input, shape index: {}]
  %s12 = inlined_call_operand.vmem [shape: f32[2,1,64], index: 12, kind: input, shape index: {}]
  %s13 = inlined_call_operand.vmem [shape: f32[2,1,64], index: 13, kind: input, shape index: {}]
  %s14 = inlined_call_operand.vmem [shape: bf16[64,256], index: 14, kind: input, shape index: {}]
  %s15 = inlined_call_operand.vmem [shape: f32[1,256], index: 15, kind: input, shape index: {}]
  %s16 = inlined_call_operand.vmem [shape: f32[16,256], index: 16, kind: output, shape index: {}]
  %s17 = sld [smem:[#allocation0]]
  $region74: #{chess_model_forward.1} parent=0
    _
  %s19 = ssub.s32 1, %s17
  %s20 = scalar_select 0, %s19, %s17
  // Predicated region
  $region2: #{chess_model_forward.1} parent=0 // pred_check
    _
  $region3: #{chess_model_forward.1} parent=0 // pred_check_branch
    %22 = sbr.rel (0) target = $region5
  $region4: #{chess_model_forward.1} parent=0 // pred_region
    _
  $region5: #{chess_model_forward.1} parent=0 // pred_fallthru
    _
  // Predicated region
  $region6: #{chess_model_forward.1} parent=0 // pred_check
    _
  $region7: #{chess_model_forward.1} parent=0 // pred_check_branch
    %24 = sbr.rel (0) target = $region9
  $region8: #{chess_model_forward.1} parent=0 // pred_region
    _
  $region9: #{chess_model_forward.1} parent=0 // pred_fallthru
    _
  // Predicated region
  $region10: #{chess_model_forward.1} parent=0 // pred_check
    _
  $region11: #{chess_model_forward.1} parent=0 // pred_check_branch
    %26 = sbr.rel (0) target = $region13
  $region12: #{chess_model_forward.1} parent=0 // pred_region
    _
  $region13: #{chess_model_forward.1} parent=0 // pred_fallthru
    _
  // Predicated region
  $region14: #{chess_model_forward.1} parent=0 // pred_check
    _
  $region15: #{chess_model_forward.1} parent=0 // pred_check_branch
    %28 = sbr.rel (0) target = $region17
  $region16: #{chess_model_forward.1} parent=0 // pred_region
    _
  $region17: #{chess_model_forward.1} parent=0 // pred_fallthru
    _
  // Predicated region
  $region18: #{chess_model_forward.1} parent=0 // pred_check
    _
  $region19: #{chess_model_forward.1} parent=0 // pred_check_branch
    %30 = sbr.rel (0) target = $region21
  $region20: #{chess_model_forward.1} parent=0 // pred_region
    _
  $region21: #{chess_model_forward.1} parent=0 // pred_fallthru
    _
  // Predicated region
  $region22: #{chess_model_forward.1} parent=0 // pred_check
    _
  $region23: #{chess_model_forward.1} parent=0 // pred_check_branch
    %32 = sbr.rel (0) target = $region25
  $region24: #{chess_model_forward.1} parent=0 // pred_region
    _
  $region25: #{chess_model_forward.1} parent=0 // pred_fallthru
    _
  // Predicated region
  $region26: #{chess_model_forward.1} parent=0 // pred_check
    _
  $region27: #{chess_model_forward.1} parent=0 // pred_check_branch
    %34 = sbr.rel (0) target = $region29
  $region28: #{chess_model_forward.1} parent=0 // pred_region
    _
  $region29: #{chess_model_forward.1} parent=0 // pred_fallthru
    _
  // Predicated region
  $region30: #{chess_model_forward.1} parent=0 // pred_check
    _
  $region31: #{chess_model_forward.1} parent=0 // pred_check_branch
    %36 = sbr.rel (0) target = $region33
  $region32: #{chess_model_forward.1} parent=0 // pred_region
    _
  $region33: #{chess_model_forward.1} parent=0 // pred_fallthru
    _
  // Predicated region
  $region34: #{chess_model_forward.1} parent=0 // pred_check
    _
  $region35: #{chess_model_forward.1} parent=0 // pred_check_branch
    %38 = sbr.rel (0) target = $region37
  $region36: #{chess_model_forward.1} parent=0 // pred_region
    _
  $region37: #{chess_model_forward.1} parent=0 // pred_fallthru
    _
  // Predicated region
  $region38: #{chess_model_forward.1} parent=0 // pred_check
    _
  $region39: #{chess_model_forward.1} parent=0 // pred_check_branch
    %40 = sbr.rel (0) target = $region41
  $region40: #{chess_model_forward.1} parent=0 // pred_region
    _
  $region41: #{chess_model_forward.1} parent=0 // pred_fallthru
    _
  // Predicated region
  $region42: #{chess_model_forward.1} parent=0 // pred_check
    _
  $region43: #{chess_model_forward.1} parent=0 // pred_check_branch
    %42 = sbr.rel (0) target = $region45
  $region44: #{chess_model_forward.1} parent=0 // pred_region
    _
  $region45: #{chess_model_forward.1} parent=0 // pred_fallthru
    _
  // Predicated region
  $region46: #{chess_model_forward.1} parent=0 // pred_check
    _
  $region47: #{chess_model_forward.1} parent=0 // pred_check_branch
    %44 = sbr.rel (0) target = $region49
  $region48: #{chess_model_forward.1} parent=0 // pred_region
    _
  $region49: #{chess_model_forward.1} parent=0 // pred_fallthru
    _
  // Predicated region
  $region50: #{chess_model_forward.1} parent=0 // pred_check
    _
  $region51: #{chess_model_forward.1} parent=0 // pred_check_branch
    %46 = sbr.rel (0) target = $region53
  $region52: #{chess_model_forward.1} parent=0 // pred_region
    _
  $region53: #{chess_model_forward.1} parent=0 // pred_fallthru
    _
  // Predicated region
  $region54: #{chess_model_forward.1} parent=0 // pred_check
    _
  $region55: #{chess_model_forward.1} parent=0 // pred_check_branch
    %48 = sbr.rel (0) target = $region57
  $region56: #{chess_model_forward.1} parent=0 // pred_region
    _
  $region57: #{chess_model_forward.1} parent=0 // pred_fallthru
    _
  // Predicated region
  $region58: #{chess_model_forward.1} parent=0 // pred_check
    _
  $region59: #{chess_model_forward.1} parent=0 // pred_check_branch
    %50 = sbr.rel (0) target = $region61
  $region60: #{chess_model_forward.1} parent=0 // pred_region
    _
  $region61: #{chess_model_forward.1} parent=0 // pred_fallthru
    _
  // Predicated region
  $region62: #{chess_model_forward.1} parent=0 // pred_check
    _
  $region63: #{chess_model_forward.1} parent=0 // pred_check_branch
    %52 = sbr.rel (0) target = $region65
  $region64: #{chess_model_forward.1} parent=0 // pred_region
    _
  $region65: #{chess_model_forward.1} parent=0 // pred_fallthru
    _
  %v54 = vld [vmem:[%s0] sm:$0xff]
  %v55 = vld [vmem:[%s0 + $0x8] sm:$0xff]
  %v56 = vld [vmem:[%s1] sm:$0xff]
  %v57 = vld [vmem:[%s1 + $0x8] sm:$0xff]
  %v58 = vld [vmem:[%s2] sm:$0xff]
  %v59 = vld [vmem:[%s2 + $0x8] sm:$0xff]
  %v60 = vld [vmem:[%s2 + $0x10] sm:$0xff]
  %v61 = vld [vmem:[%s2 + $0x18] sm:$0xff]
  %v62 = vld [vmem:[%s2 + $0x20] sm:$0xff]
  %v63 = vld [vmem:[%s2 + $0x28] sm:$0xff]
  %v64 = vld [vmem:[%s2 + $0x30] sm:$0xff]
  %v65 = vld [vmem:[%s2 + $0x38] sm:$0xff]
  %v66 = vld [vmem:[%s4] sm:$0xf]
  %v67 = vld [vmem:[%s4 + $0x4] sm:$0xf]
  %v68 = vld [vmem:[%s4 + $0x8] sm:$0xf]
  %v69 = vld [vmem:[%s4 + $0xc] sm:$0xf]
  %v70 = vld [vmem:[%s4 + $0x10] sm:$0xf]
  %v71 = vld [vmem:[%s4 + $0x14] sm:$0xf]
  %v72 = vld [vmem:[%s4 + $0x18] sm:$0xf]
  %v73 = vld [vmem:[%s4 + $0x1c] sm:$0xf]
  %v74 = vld [vmem:[%s8] sm:$0xf]
  %v75 = vld [vmem:[%s8 + $0x4] sm:$0xf]
  %v76 = vld [vmem:[%s8 + $0x8] sm:$0xf]
  %v77 = vld [vmem:[%s8 + $0xc] sm:$0xf]
  %v78 = vld [vmem:[%s8 + $0x10] sm:$0xf]
  %v79 = vld [vmem:[%s8 + $0x14] sm:$0xf]
  %v80 = vld [vmem:[%s8 + $0x18] sm:$0xf]
  %v81 = vld [vmem:[%s8 + $0x1c] sm:$0xf]
  %v82 = vld [vmem:[%s10] sm:$0xf]
  %v83 = vld [vmem:[%s10 + $0x4] sm:$0xf]
  %v84 = vld [vmem:[%s10 + $0x8] sm:$0xf]
  %v85 = vld [vmem:[%s10 + $0xc] sm:$0xf]
  %v86 = vld [vmem:[%s10 + $0x10] sm:$0xf]
  %v87 = vld [vmem:[%s10 + $0x14] sm:$0xf]
  %v88 = vld [vmem:[%s10 + $0x18] sm:$0xf]
  %v89 = vld [vmem:[%s10 + $0x1c] sm:$0xf]
  %v90 = vld [vmem:[%s10 + $0x20] sm:$0xf]
  %v91 = vld [vmem:[%s10 + $0x24] sm:$0xf]
  %v92 = vld [vmem:[%s10 + $0x28] sm:$0xf]
  %v93 = vld [vmem:[%s10 + $0x2c] sm:$0xf]
  %v94 = vld [vmem:[%s10 + $0x30] sm:$0xf]
  %v95 = vld [vmem:[%s10 + $0x34] sm:$0xf]
  %v96 = vld [vmem:[%s10 + $0x38] sm:$0xf]
  %v97 = vld [vmem:[%s10 + $0x3c] sm:$0xf]
  %v98 = vpack.c.bf16 %v55, %v54
  %v99 = vld [vmem:[%s3] sm:$0x3]
  %v101 = vlaneseq
  %v102 = vshrl.u32 %v101, 7
  %v103 = vsub.s32 0, %v102
  %v104 = vrot.slane %v99, %v103
  %v105 = vlaneseq
  %v106 = vshrl.u32 %v105, 7
  %v107 = vsub.s32 1, %v106
  %v108 = vrot.slane %v99, %v107
  %v119 = vunpack.c.l.b16 %v58
  %v120 = vunpack.c.h.b16 %v58
  %v121 = vunpack.c.l.b16 %v59
  %v122 = vunpack.c.h.b16 %v59
  %v123 = vunpack.c.l.b16 %v60
  %v124 = vunpack.c.h.b16 %v60
  %v125 = vunpack.c.l.b16 %v61
  %v126 = vunpack.c.h.b16 %v61
  %v127 = vunpack.c.l.b16 %v62
  %v128 = vunpack.c.h.b16 %v62
  %v129 = vunpack.c.l.b16 %v63
  %v130 = vunpack.c.h.b16 %v63
  %v131 = vunpack.c.l.b16 %v64
  %v132 = vunpack.c.h.b16 %v64
  %v133 = vunpack.c.l.b16 %v65
  %v134 = vunpack.c.h.b16 %v65
  %v135 = vpack.c.b16 %v121, %v119
  %v136 = vpack.c.b16 %v122, %v120
  %v137 = vpack.c.b16 %v125, %v123
  %v138 = vpack.c.b16 %v126, %v124
  %v139 = vpack.c.b16 %v129, %v127
  %v140 = vpack.c.b16 %v130, %v128
  %v141 = vpack.c.b16 %v133, %v131
  %v142 = vpack.c.b16 %v134, %v132
  %vm151 = vcmask 523264
  %v153 = vsel %vm151, %v98, 0
  %155 = vmatprep.subr.bf16.mxu0 0
  %156 = vmatpush1.bf16.msra.mxu0 0
  %157 = vmatprep.subr.bf16.mxu0 0
  %158 = vmatpush1.bf16.msra.mxu0 0
  %159 = vmatprep.subr.bf16.mxu0 0
  %160 = vmatpush1.bf16.msra.mxu0 0
  %161 = vmatprep.subr.bf16.mxu0 0
  %162 = vmatpush1.bf16.msra.mxu0 0
  %163 = vmatprep.subr.bf16.mxu0 %v142
  %164 = vmatpush1.bf16.msra.mxu0 %v141
  %165 = vmatprep.subr.bf16.mxu0 %v140
  %166 = vmatpush1.bf16.msra.mxu0 %v139
  %167 = vmatprep.subr.bf16.mxu0 %v138
  %168 = vmatpush1.bf16.msra.mxu0 %v137
  %169 = vmatprep.subr.bf16.mxu0 %v136
  %170 = vmatpush1.bf16.msra.mxu0 %v135
  %171 = vmatprep.subr.bf16.mxu0 0
  %172 = vmatpush2.bf16.msra.mxu0 0
  %173 = vmatprep.subr.bf16.mxu0 0
  %174 = vmatpush2.bf16.msra.mxu0 0
  %175 = vmatprep.subr.bf16.mxu0 0
  %176 = vmatpush2.bf16.msra.mxu0 0
  %177 = vmatprep.subr.bf16.mxu0 0
  %178 = vmatpush2.bf16.msra.mxu0 0
  %179 = vmatprep.subr.bf16.mxu0 0
  %180 = vmatpush2.bf16.msra.mxu0 0
  %181 = vmatprep.subr.bf16.mxu0 0
  %182 = vmatpush2.bf16.msra.mxu0 0
  %183 = vmatprep.subr.bf16.mxu0 0
  %184 = vmatpush2.bf16.msra.mxu0 0
  %185 = vmatprep.subr.bf16.mxu0 0
  %186 = vmatpush2.bf16.msra.mxu0 0
  %187 = vmatprep.mubr.bf16.mxu0 0
  %188 = vmatmul.mubr.bf16.gmra.mxu0 %v153
  %v189 = vpop.f32.mrf.mxu0
  %v190 = vadd.f32 %v104, %v189
  %v191 = vpop.f32.mrf.mxu0
  %v192 = vadd.f32 %v108, %v191
  %v193 = vpop.f32.mrf.mxu0
  %v194 = vadd.f32 %v104, %v193
  %v195 = vpop.f32.mrf.mxu0
  %v196 = vadd.f32 %v108, %v195
  %197 = vdwg.mxu0
  %v198 = vpack.c.bf16 %v194, %v190
  %v199 = vpack.c.bf16 %v196, %v192
  %201 = vrot.lane.b32.xlu0 %v198, 64
  %v202 = vpop.permute.xlu0 %201
  %vm203 = vcmask 130048
  %v205 = vsel %vm203, %v198, 0
  %v208 = vsel %vm203, %v202, 0
  %210 = vmatprep.subr.bf16.mxu0 0
  %211 = vmatpush1.bf16.xpose.msra.mxu0 0
  %212 = vmatprep.subr.bf16.mxu0 0
  %213 = vmatpush1.bf16.xpose.msra.mxu0 0
  %214 = vmatprep.subr.bf16.mxu0 0
  %215 = vmatpush1.bf16.xpose.msra.mxu0 0
  %216 = vmatprep.subr.bf16.mxu0 0
  %217 = vmatpush1.bf16.xpose.msra.mxu0 0
  %218 = vmatprep.subr.bf16.mxu0 0
  %219 = vmatpush1.bf16.xpose.msra.mxu0 0
  %220 = vmatprep.subr.bf16.mxu0 0
  %221 = vmatpush1.bf16.xpose.msra.mxu0 0
  %222 = vmatprep.subr.bf16.mxu0 0
  %223 = vmatpush1.bf16.xpose.msra.mxu0 0
  %224 = vmatprep.subr.bf16.mxu0 0
  %225 = vmatpush1.bf16.xpose.msra.mxu0 %v208
  %226 = vmatprep.subr.bf16.mxu0 0
  %227 = vmatpush2.bf16.xpose.msra.mxu0 0
  %228 = vmatprep.subr.bf16.mxu0 0
  %229 = vmatpush2.bf16.xpose.msra.mxu0 0
  %230 = vmatprep.subr.bf16.mxu0 0
  %231 = vmatpush2.bf16.xpose.msra.mxu0 0
  %232 = vmatprep.subr.bf16.mxu0 0
  %233 = vmatpush2.bf16.xpose.msra.mxu0 0
  %234 = vmatprep.subr.bf16.mxu0 0
  %235 = vmatpush2.bf16.xpose.msra.mxu0 0
  %236 = vmatprep.subr.bf16.mxu0 0
  %237 = vmatpush2.bf16.xpose.msra.mxu0 0
  %238 = vmatprep.subr.bf16.mxu0 0
  %239 = vmatpush2.bf16.xpose.msra.mxu0 0
  %240 = vmatprep.subr.bf16.mxu0 0
  %241 = vmatpush2.bf16.xpose.msra.mxu0 0
  %242 = vmatprep.mubr.bf16.mxu0 0
  %243 = vmatmul.mubr.bf16.gmra.mxu0 %v205
  %v244 = vpop.f32.mrf.mxu0
  %v245 = vadd.f32 %v56, %v244
  %v246 = vpop.f32.mrf.mxu0
  %v247 = vpop.f32.mrf.mxu0
  %v248 = vadd.f32 %v57, %v247
  %v249 = vpop.f32.mrf.mxu0
  %250 = vdwg.mxu0
  %v251 = vsel %vm203, %v245, -inf
  %252 = vmax.xlane.f32.xlu0 %v251
  %v253 = vpop.xlane.xlu0 %252
  %v254 = vsel %vm203, %v248, -inf
  %255 = vmax.xlane.f32.xlu0 %v254
  %v256 = vpop.xlane.xlu0 %255
  %v257 = vsub.f32 %v245, %v253
  %v258 = vsub.f32 %v248, %v256
  %v259 = vmul.f32 %v257, 1.442695
  %v260 = vpow.pop %v259
  %v261 = vmul.f32 %v258, 1.442695
  %v262 = vpow.pop %v261
  %v263 = vsel %vm203, %v260, 0.0
  %264 = vadd.xlane.f32.xlu0 %v263
  %v265 = vpop.xlane.xlu0 %264
  %v266 = vsel %vm203, %v262, 0.0
  %267 = vadd.xlane.f32.xlu0 %v266
  %v268 = vpop.xlane.xlu0 %267
  %v269 = vrcp.pop %v265
  %v270 = vrcp.pop %v268
  %v271 = vmul.f32 %v260, %v269
  %v272 = vmul.f32 %v262, %v270
  %v273 = vpack.c.bf16 %v272, %v271
  %v275 = vsel %vm203, %v273, 0
  %277 = vmatprep.subr.bf16.mxu0 0
  %278 = vmatpush1.bf16.msra.mxu0 0
  %279 = vmatprep.subr.bf16.mxu0 0
  %280 = vmatpush1.bf16.msra.mxu0 0
  %281 = vmatprep.subr.bf16.mxu0 0
  %282 = vmatpush1.bf16.msra.mxu0 0
  %283 = vmatprep.subr.bf16.mxu0 0
  %284 = vmatpush1.bf16.msra.mxu0 0
  %285 = vmatprep.subr.bf16.mxu0 0
  %286 = vmatpush1.bf16.msra.mxu0 0
  %287 = vmatprep.subr.bf16.mxu0 0
  %288 = vmatpush1.bf16.msra.mxu0 0
  %289 = vmatprep.subr.bf16.mxu0 0
  %290 = vmatpush1.bf16.msra.mxu0 0
  %291 = vmatprep.subr.bf16.mxu0 0
  %292 = vmatpush1.bf16.msra.mxu0 %v199
  %293 = vmatprep.subr.bf16.mxu0 0
  %294 = vmatpush2.bf16.msra.mxu0 0
  %295 = vmatprep.subr.bf16.mxu0 0
  %296 = vmatpush2.bf16.msra.mxu0 0
  %297 = vmatprep.subr.bf16.mxu0 0
  %298 = vmatpush2.bf16.msra.mxu0 0
  %299 = vmatprep.subr.bf16.mxu0 0
  %300 = vmatpush2.bf16.msra.mxu0 0
  %301 = vmatprep.subr.bf16.mxu0 0
  %302 = vmatpush2.bf16.msra.mxu0 0
  %303 = vmatprep.subr.bf16.mxu0 0
  %304 = vmatpush2.bf16.msra.mxu0 0
  %305 = vmatprep.subr.bf16.mxu0 0
  %306 = vmatpush2.bf16.msra.mxu0 0
  %307 = vmatprep.subr.bf16.mxu0 0
  %308 = vmatpush2.bf16.msra.mxu0 0
  %309 = vmatprep.mubr.bf16.mxu0 0
  %310 = vmatmul.mubr.bf16.gmra.mxu0 %v275
  %v311 = vpop.f32.mrf.mxu0
  %v312 = vadd.f32 0.0, %v311
  %v313 = vpop.f32.mrf.mxu0
  %v314 = vpop.f32.mrf.mxu0
  %v315 = vadd.f32 0.0, %v314
  %v316 = vpop.f32.mrf.mxu0
  %317 = vdwg.mxu0
  %v318 = vpack.c.bf16 %v315, %v312
  %319 = vrot.lane.b32.xlu0 %v198, 112
  %v320 = vpop.permute.xlu0 %319
  %321 = vrot.lane.b32.xlu0 %v198, 48
  %v322 = vpop.permute.xlu0 %321
  %v324 = vsel %vm203, %v320, 0
  %v327 = vsel %vm203, %v322, 0
  %329 = vmatprep.subr.bf16.mxu0 0
  %330 = vmatpush1.bf16.xpose.msra.mxu0 0
  %331 = vmatprep.subr.bf16.mxu0 0
  %332 = vmatpush1.bf16.xpose.msra.mxu0 0
  %333 = vmatprep.subr.bf16.mxu0 0
  %334 = vmatpush1.bf16.xpose.msra.mxu0 0
  %335 = vmatprep.subr.bf16.mxu0 0
  %336 = vmatpush1.bf16.xpose.msra.mxu0 0
  %337 = vmatprep.subr.bf16.mxu0 0
  %338 = vmatpush1.bf16.xpose.msra.mxu0 0
  %339 = vmatprep.subr.bf16.mxu0 0
  %340 = vmatpush1.bf16.xpose.msra.mxu0 0
  %341 = vmatprep.subr.bf16.mxu0 0
  %342 = vmatpush1.bf16.xpose.msra.mxu0 0
  %343 = vmatprep.subr.bf16.mxu0 0
  %344 = vmatpush1.bf16.xpose.msra.mxu0 %v327
  %345 = vmatprep.subr.bf16.mxu0 0
  %346 = vmatpush2.bf16.xpose.msra.mxu0 0
  %347 = vmatprep.subr.bf16.mxu0 0
  %348 = vmatpush2.bf16.xpose.msra.mxu0 0
  %349 = vmatprep.subr.bf16.mxu0 0
  %350 = vmatpush2.bf16.xpose.msra.mxu0 0
  %351 = vmatprep.subr.bf16.mxu0 0
  %352 = vmatpush2.bf16.xpose.msra.mxu0 0
  %353 = vmatprep.subr.bf16.mxu0 0
  %354 = vmatpush2.bf16.xpose.msra.mxu0 0
  %355 = vmatprep.subr.bf16.mxu0 0
  %356 = vmatpush2.bf16.xpose.msra.mxu0 0
  %357 = vmatprep.subr.bf16.mxu0 0
  %358 = vmatpush2.bf16.xpose.msra.mxu0 0
  %359 = vmatprep.subr.bf16.mxu0 0
  %360 = vmatpush2.bf16.xpose.msra.mxu0 0
  %361 = vmatprep.mubr.bf16.mxu0 0
  %362 = vmatmul.mubr.bf16.gmra.mxu0 %v324
  %v363 = vpop.f32.mrf.mxu0
  %v364 = vadd.f32 %v56, %v363
  %v365 = vpop.f32.mrf.mxu0
  %v366 = vpop.f32.mrf.mxu0
  %v367 = vadd.f32 %v57, %v366
  %v368 = vpop.f32.mrf.mxu0
  %369 = vdwg.mxu0
  %v370 = vsel %vm203, %v364, -inf
  %371 = vmax.xlane.f32.xlu0 %v370
  %v372 = vpop.xlane.xlu0 %371
  %v373 = vsel %vm203, %v367, -inf
  %374 = vmax.xlane.f32.xlu0 %v373
  %v375 = vpop.xlane.xlu0 %374
  %v376 = vsub.f32 %v364, %v372
  %v377 = vsub.f32 %v367, %v375
  %v378 = vmul.f32 %v376, 1.442695
  %v379 = vpow.pop %v378
  %v380 = vmul.f32 %v377, 1.442695
  %v381 = vpow.pop %v380
  %v382 = vsel %vm203, %v379, 0.0
  %383 = vadd.xlane.f32.xlu0 %v382
  %v384 = vpop.xlane.xlu0 %383
  %v385 = vsel %vm203, %v381, 0.0
  %386 = vadd.xlane.f32.xlu0 %v385
  %v387 = vpop.xlane.xlu0 %386
  %v388 = vrcp.pop %v384
  %v389 = vrcp.pop %v387
  %v390 = vmul.f32 %v379, %v388
  %v391 = vmul.f32 %v381, %v389
  %v392 = vpack.c.bf16 %v391, %v390
  %394 = vrot.lane.b32.xlu0 %v199, 112
  %v395 = vpop.permute.xlu0 %394
  %v398 = vsel %vm203, %v392, 0
  %400 = vmatprep.subr.bf16.mxu0 0
  %401 = vmatpush1.bf16.msra.mxu0 0
  %402 = vmatprep.subr.bf16.mxu0 0
  %403 = vmatpush1.bf16.msra.mxu0 0
  %404 = vmatprep.subr.bf16.mxu0 0
  %405 = vmatpush1.bf16.msra.mxu0 0
  %406 = vmatprep.subr.bf16.mxu0 0
  %407 = vmatpush1.bf16.msra.mxu0 0
  %408 = vmatprep.subr.bf16.mxu0 0
  %409 = vmatpush1.bf16.msra.mxu0 0
  %410 = vmatprep.subr.bf16.mxu0 0
  %411 = vmatpush1.bf16.msra.mxu0 0
  %412 = vmatprep.subr.bf16.mxu0 0
  %413 = vmatpush1.bf16.msra.mxu0 0
  %414 = vmatprep.subr.bf16.mxu0 0
  %415 = vmatpush1.bf16.msra.mxu0 %v395
  %416 = vmatprep.subr.bf16.mxu0 0
  %417 = vmatpush2.bf16.msra.mxu0 0
  %418 = vmatprep.subr.bf16.mxu0 0
  %419 = vmatpush2.bf16.msra.mxu0 0
  %420 = vmatprep.subr.bf16.mxu0 0
  %421 = vmatpush2.bf16.msra.mxu0 0
  %422 = vmatprep.subr.bf16.mxu0 0
  %423 = vmatpush2.bf16.msra.mxu0 0
  %424 = vmatprep.subr.bf16.mxu0 0
  %425 = vmatpush2.bf16.msra.mxu0 0
  %426 = vmatprep.subr.bf16.mxu0 0
  %427 = vmatpush2.bf16.msra.mxu0 0
  %428 = vmatprep.subr.bf16.mxu0 0
  %429 = vmatpush2.bf16.msra.mxu0 0
  %430 = vmatprep.subr.bf16.mxu0 0
  %431 = vmatpush2.bf16.msra.mxu0 0
  %432 = vmatprep.mubr.bf16.mxu0 0
  %433 = vmatmul.mubr.bf16.gmra.mxu0 %v398
  %v434 = vpop.f32.mrf.mxu0
  %v435 = vadd.f32 0.0, %v434
  %v436 = vpop.f32.mrf.mxu0
  %v437 = vpop.f32.mrf.mxu0
  %v438 = vadd.f32 0.0, %v437
  %v439 = vpop.f32.mrf.mxu0
  %440 = vdwg.mxu0
  %v441 = vpack.c.bf16 %v438, %v435
  %v444 = vunpack.c.l.b16 %v68
  %v445 = vunpack.c.l.b16 %v69
  %v446 = vpack.c.b16 %v445, %v444
  %v449 = vsel %vm203, %v441, 0
  %451 = vmatprep.subr.bf16.mxu0 0
  %452 = vmatpush1.bf16.msra.mxu0 0
  %453 = vmatprep.subr.bf16.mxu0 0
  %454 = vmatpush1.bf16.msra.mxu0 0
  %455 = vmatprep.subr.bf16.mxu0 0
  %456 = vmatpush1.bf16.msra.mxu0 0
  %457 = vmatprep.subr.bf16.mxu0 0
  %458 = vmatpush1.bf16.msra.mxu0 0
  %459 = vmatprep.subr.bf16.mxu0 0
  %460 = vmatpush1.bf16.msra.mxu0 0
  %461 = vmatprep.subr.bf16.mxu0 0
  %462 = vmatpush1.bf16.msra.mxu0 0
  %463 = vmatprep.subr.bf16.mxu0 0
  %464 = vmatpush1.bf16.msra.mxu0 0
  %465 = vmatprep.subr.bf16.mxu0 0
  %466 = vmatpush1.bf16.msra.mxu0 %v446
  %467 = vmatprep.subr.bf16.mxu0 0
  %468 = vmatpush2.bf16.msra.mxu0 0
  %469 = vmatprep.subr.bf16.mxu0 0
  %470 = vmatpush2.bf16.msra.mxu0 0
  %471 = vmatprep.subr.bf16.mxu0 0
  %472 = vmatpush2.bf16.msra.mxu0 0
  %473 = vmatprep.subr.bf16.mxu0 0
  %474 = vmatpush2.bf16.msra.mxu0 0
  %475 = vmatprep.subr.bf16.mxu0 0
  %476 = vmatpush2.bf16.msra.mxu0 0
  %477 = vmatprep.subr.bf16.mxu0 0
  %478 = vmatpush2.bf16.msra.mxu0 0
  %479 = vmatprep.subr.bf16.mxu0 0
  %480 = vmatpush2.bf16.msra.mxu0 0
  %481 = vmatprep.subr.bf16.mxu0 0
  %482 = vmatpush2.bf16.msra.mxu0 0
  %483 = vmatprep.mubr.bf16.mxu0 0
  %484 = vmatmul.mubr.bf16.gmra.mxu0 %v449
  %v485 = vpop.f32.mrf.mxu0
  %v486 = vadd.f32 0.0, %v485
  %v487 = vpop.f32.mrf.mxu0
  %v488 = vpop.f32.mrf.mxu0
  %v489 = vadd.f32 0.0, %v488
  %v490 = vpop.f32.mrf.mxu0
  %491 = vdwg.mxu0
  %v494 = vunpack.c.l.b16 %v66
  %v495 = vunpack.c.l.b16 %v67
  %v496 = vpack.c.b16 %v495, %v494
  %v499 = vsel %vm203, %v318, 0
  %501 = vmatprep.subr.bf16.mxu0 0
  %502 = vmatpush1.bf16.msra.mxu0 0
  %503 = vmatprep.subr.bf16.mxu0 0
  %504 = vmatpush1.bf16.msra.mxu0 0
  %505 = vmatprep.subr.bf16.mxu0 0
  %506 = vmatpush1.bf16.msra.mxu0 0
  %507 = vmatprep.subr.bf16.mxu0 0
  %508 = vmatpush1.bf16.msra.mxu0 0
  %509 = vmatprep.subr.bf16.mxu0 0
  %510 = vmatpush1.bf16.msra.mxu0 0
  %511 = vmatprep.subr.bf16.mxu0 0
  %512 = vmatpush1.bf16.msra.mxu0 0
  %513 = vmatprep.subr.bf16.mxu0 0
  %514 = vmatpush1.bf16.msra.mxu0 0
  %515 = vmatprep.subr.bf16.mxu0 0
  %516 = vmatpush1.bf16.msra.mxu0 %v496
  %517 = vmatprep.subr.bf16.mxu0 0
  %518 = vmatpush2.bf16.msra.mxu0 0
  %519 = vmatprep.subr.bf16.mxu0 0
  %520 = vmatpush2.bf16.msra.mxu0 0
  %521 = vmatprep.subr.bf16.mxu0 0
  %522 = vmatpush2.bf16.msra.mxu0 0
  %523 = vmatprep.subr.bf16.mxu0 0
  %524 = vmatpush2.bf16.msra.mxu0 0
  %525 = vmatprep.subr.bf16.mxu0 0
  %526 = vmatpush2.bf16.msra.mxu0 0
  %527 = vmatprep.subr.bf16.mxu0 0
  %528 = vmatpush2.bf16.msra.mxu0 0
  %529 = vmatprep.subr.bf16.mxu0 0
  %530 = vmatpush2.bf16.msra.mxu0 0
  %531 = vmatprep.subr.bf16.mxu0 0
  %532 = vmatpush2.bf16.msra.mxu0 0
  %533 = vmatprep.mubr.bf16.mxu0 0
  %534 = vmatmul.mubr.bf16.gmra.mxu0 %v499
  %v535 = vpop.f32.mrf.mxu0
  %v536 = vadd.f32 %v486, %v535
  %v537 = vpop.f32.mrf.mxu0
  %v538 = vpop.f32.mrf.mxu0
  %v539 = vadd.f32 %v489, %v538
  %v540 = vpop.f32.mrf.mxu0
  %541 = vdwg.mxu0
  %542 = vrot.lane.b32.xlu0 %v198, 96
  %v543 = vpop.permute.xlu0 %542
  %544 = vrot.lane.b32.xlu0 %v198, 32
  %v545 = vpop.permute.xlu0 %544
  %v547 = vsel %vm203, %v543, 0
  %v550 = vsel %vm203, %v545, 0
  %552 = vmatprep.subr.bf16.mxu0 0
  %553 = vmatpush1.bf16.xpose.msra.mxu0 0
  %554 = vmatprep.subr.bf16.mxu0 0
  %555 = vmatpush1.bf16.xpose.msra.mxu0 0
  %556 = vmatprep.subr.bf16.mxu0 0
  %557 = vmatpush1.bf16.xpose.msra.mxu0 0
  %558 = vmatprep.subr.bf16.mxu0 0
  %559 = vmatpush1.bf16.xpose.msra.mxu0 0
  %560 = vmatprep.subr.bf16.mxu0 0
  %561 = vmatpush1.bf16.xpose.msra.mxu0 0
  %562 = vmatprep.subr.bf16.mxu0 0
  %563 = vmatpush1.bf16.xpose.msra.mxu0 0
  %564 = vmatprep.subr.bf16.mxu0 0
  %565 = vmatpush1.bf16.xpose.msra.mxu0 0
  %566 = vmatprep.subr.bf16.mxu0 0
  %567 = vmatpush1.bf16.xpose.msra.mxu0 %v550
  %568 = vmatprep.subr.bf16.mxu0 0
  %569 = vmatpush2.bf16.xpose.msra.mxu0 0
  %570 = vmatprep.subr.bf16.mxu0 0
  %571 = vmatpush2.bf16.xpose.msra.mxu0 0
  %572 = vmatprep.subr.bf16.mxu0 0
  %573 = vmatpush2.bf16.xpose.msra.mxu0 0
  %574 = vmatprep.subr.bf16.mxu0 0
  %575 = vmatpush2.bf16.xpose.msra.mxu0 0
  %576 = vmatprep.subr.bf16.mxu0 0
  %577 = vmatpush2.bf16.xpose.msra.mxu0 0
  %578 = vmatprep.subr.bf16.mxu0 0
  %579 = vmatpush2.bf16.xpose.msra.mxu0 0
  %580 = vmatprep.subr.bf16.mxu0 0
  %581 = vmatpush2.bf16.xpose.msra.mxu0 0
  %582 = vmatprep.subr.bf16.mxu0 0
  %583 = vmatpush2.bf16.xpose.msra.mxu0 0
  %584 = vmatprep.mubr.bf16.mxu0 0
  %585 = vmatmul.mubr.bf16.gmra.mxu0 %v547
  %v586 = vpop.f32.mrf.mxu0
  %v587 = vadd.f32 %v56, %v586
  %v588 = vpop.f32.mrf.mxu0
  %v589 = vpop.f32.mrf.mxu0
  %v590 = vadd.f32 %v57, %v589
  %v591 = vpop.f32.mrf.mxu0
  %592 = vdwg.mxu0
  %v593 = vsel %vm203, %v587, -inf
  %594 = vmax.xlane.f32.xlu0 %v593
  %v595 = vpop.xlane.xlu0 %594
  %v596 = vsel %vm203, %v590, -inf
  %597 = vmax.xlane.f32.xlu0 %v596
  %v598 = vpop.xlane.xlu0 %597
  %v599 = vsub.f32 %v587, %v595
  %v600 = vsub.f32 %v590, %v598
  %v601 = vmul.f32 %v599, 1.442695
  %v602 = vpow.pop %v601
  %v603 = vmul.f32 %v600, 1.442695
  %v604 = vpow.pop %v603
  %v605 = vsel %vm203, %v602, 0.0
  %606 = vadd.xlane.f32.xlu0 %v605
  %v607 = vpop.xlane.xlu0 %606
  %v608 = vsel %vm203, %v604, 0.0
  %609 = vadd.xlane.f32.xlu0 %v608
  %v610 = vpop.xlane.xlu0 %609
  %v611 = vrcp.pop %v607
  %v612 = vrcp.pop %v610
  %v613 = vmul.f32 %v602, %v611
  %v614 = vmul.f32 %v604, %v612
  %v615 = vpack.c.bf16 %v614, %v613
  %616 = vrot.lane.b32.xlu0 %v199, 96
  %v617 = vpop.permute.xlu0 %616
  %v620 = vsel %vm203, %v615, 0
  %622 = vmatprep.subr.bf16.mxu0 0
  %623 = vmatpush1.bf16.msra.mxu0 0
  %624 = vmatprep.subr.bf16.mxu0 0
  %625 = vmatpush1.bf16.msra.mxu0 0
  %626 = vmatprep.subr.bf16.mxu0 0
  %627 = vmatpush1.bf16.msra.mxu0 0
  %628 = vmatprep.subr.bf16.mxu0 0
  %629 = vmatpush1.bf16.msra.mxu0 0
  %630 = vmatprep.subr.bf16.mxu0 0
  %631 = vmatpush1.bf16.msra.mxu0 0
  %632 = vmatprep.subr.bf16.mxu0 0
  %633 = vmatpush1.bf16.msra.mxu0 0
  %634 = vmatprep.subr.bf16.mxu0 0
  %635 = vmatpush1.bf16.msra.mxu0 0
  %636 = vmatprep.subr.bf16.mxu0 0
  %637 = vmatpush1.bf16.msra.mxu0 %v617
  %638 = vmatprep.subr.bf16.mxu0 0
  %639 = vmatpush2.bf16.msra.mxu0 0
  %640 = vmatprep.subr.bf16.mxu0 0
  %641 = vmatpush2.bf16.msra.mxu0 0
  %642 = vmatprep.subr.bf16.mxu0 0
  %643 = vmatpush2.bf16.msra.mxu0 0
  %644 = vmatprep.subr.bf16.mxu0 0
  %645 = vmatpush2.bf16.msra.mxu0 0
  %646 = vmatprep.subr.bf16.mxu0 0
  %647 = vmatpush2.bf16.msra.mxu0 0
  %648 = vmatprep.subr.bf16.mxu0 0
  %649 = vmatpush2.bf16.msra.mxu0 0
  %650 = vmatprep.subr.bf16.mxu0 0
  %651 = vmatpush2.bf16.msra.mxu0 0
  %652 = vmatprep.subr.bf16.mxu0 0
  %653 = vmatpush2.bf16.msra.mxu0 0
  %654 = vmatprep.mubr.bf16.mxu0 0
  %655 = vmatmul.mubr.bf16.gmra.mxu0 %v620
  %v656 = vpop.f32.mrf.mxu0
  %v657 = vadd.f32 0.0, %v656
  %v658 = vpop.f32.mrf.mxu0
  %v659 = vpop.f32.mrf.mxu0
  %v660 = vadd.f32 0.0, %v659
  %v661 = vpop.f32.mrf.mxu0
  %662 = vdwg.mxu0
  %v663 = vpack.c.bf16 %v660, %v657
  %v666 = vunpack.c.l.b16 %v70
  %v667 = vunpack.c.l.b16 %v71
  %v668 = vpack.c.b16 %v667, %v666
  %v671 = vsel %vm203, %v663, 0
  %673 = vmatprep.subr.bf16.mxu0 0
  %674 = vmatpush1.bf16.msra.mxu0 0
  %675 = vmatprep.subr.bf16.mxu0 0
  %676 = vmatpush1.bf16.msra.mxu0 0
  %677 = vmatprep.subr.bf16.mxu0 0
  %678 = vmatpush1.bf16.msra.mxu0 0
  %679 = vmatprep.subr.bf16.mxu0 0
  %680 = vmatpush1.bf16.msra.mxu0 0
  %681 = vmatprep.subr.bf16.mxu0 0
  %682 = vmatpush1.bf16.msra.mxu0 0
  %683 = vmatprep.subr.bf16.mxu0 0
  %684 = vmatpush1.bf16.msra.mxu0 0
  %685 = vmatprep.subr.bf16.mxu0 0
  %686 = vmatpush1.bf16.msra.mxu0 0
  %687 = vmatprep.subr.bf16.mxu0 0
  %688 = vmatpush1.bf16.msra.mxu0 %v668
  %689 = vmatprep.subr.bf16.mxu0 0
  %690 = vmatpush2.bf16.msra.mxu0 0
  %691 = vmatprep.subr.bf16.mxu0 0
  %692 = vmatpush2.bf16.msra.mxu0 0
  %693 = vmatprep.subr.bf16.mxu0 0
  %694 = vmatpush2.bf16.msra.mxu0 0
  %695 = vmatprep.subr.bf16.mxu0 0
  %696 = vmatpush2.bf16.msra.mxu0 0
  %697 = vmatprep.subr.bf16.mxu0 0
  %698 = vmatpush2.bf16.msra.mxu0 0
  %699 = vmatprep.subr.bf16.mxu0 0
  %700 = vmatpush2.bf16.msra.mxu0 0
  %701 = vmatprep.subr.bf16.mxu0 0
  %702 = vmatpush2.bf16.msra.mxu0 0
  %703 = vmatprep.subr.bf16.mxu0 0
  %704 = vmatpush2.bf16.msra.mxu0 0
  %705 = vmatprep.mubr.bf16.mxu0 0
  %706 = vmatmul.mubr.bf16.gmra.mxu0 %v671
  %v707 = vpop.f32.mrf.mxu0
  %v708 = vadd.f32 0.0, %v707
  %v709 = vpop.f32.mrf.mxu0
  %v710 = vpop.f32.mrf.mxu0
  %v711 = vadd.f32 0.0, %v710
  %v712 = vpop.f32.mrf.mxu0
  %713 = vdwg.mxu0
  %v714 = vadd.f32 %v536, %v708
  %v715 = vadd.f32 %v539, %v711
  %716 = vrot.lane.b32.xlu0 %v198, 80
  %v717 = vpop.permute.xlu0 %716
  %718 = vrot.lane.b32.xlu0 %v198, 16
  %v719 = vpop.permute.xlu0 %718
  %v721 = vsel %vm203, %v717, 0
  %v724 = vsel %vm203, %v719, 0
  %726 = vmatprep.subr.bf16.mxu0 0
  %727 = vmatpush1.bf16.xpose.msra.mxu0 0
  %728 = vmatprep.subr.bf16.mxu0 0
  %729 = vmatpush1.bf16.xpose.msra.mxu0 0
  %730 = vmatprep.subr.bf16.mxu0 0
  %731 = vmatpush1.bf16.xpose.msra.mxu0 0
  %732 = vmatprep.subr.bf16.mxu0 0
  %733 = vmatpush1.bf16.xpose.msra.mxu0 0
  %734 = vmatprep.subr.bf16.mxu0 0
  %735 = vmatpush1.bf16.xpose.msra.mxu0 0
  %736 = vmatprep.subr.bf16.mxu0 0
  %737 = vmatpush1.bf16.xpose.msra.mxu0 0
  %738 = vmatprep.subr.bf16.mxu0 0
  %739 = vmatpush1.bf16.xpose.msra.mxu0 0
  %740 = vmatprep.subr.bf16.mxu0 0
  %741 = vmatpush1.bf16.xpose.msra.mxu0 %v724
  %742 = vmatprep.subr.bf16.mxu0 0
  %743 = vmatpush2.bf16.xpose.msra.mxu0 0
  %744 = vmatprep.subr.bf16.mxu0 0
  %745 = vmatpush2.bf16.xpose.msra.mxu0 0
  %746 = vmatprep.subr.bf16.mxu0 0
  %747 = vmatpush2.bf16.xpose.msra.mxu0 0
  %748 = vmatprep.subr.bf16.mxu0 0
  %749 = vmatpush2.bf16.xpose.msra.mxu0 0
  %750 = vmatprep.subr.bf16.mxu0 0
  %751 = vmatpush2.bf16.xpose.msra.mxu0 0
  %752 = vmatprep.subr.bf16.mxu0 0
  %753 = vmatpush2.bf16.xpose.msra.mxu0 0
  %754 = vmatprep.subr.bf16.mxu0 0
  %755 = vmatpush2.bf16.xpose.msra.mxu0 0
  %756 = vmatprep.subr.bf16.mxu0 0
  %757 = vmatpush2.bf16.xpose.msra.mxu0 0
  %758 = vmatprep.mubr.bf16.mxu0 0
  %759 = vmatmul.mubr.bf16.gmra.mxu0 %v721
  %v760 = vpop.f32.mrf.mxu0
  %v761 = vadd.f32 %v56, %v760
  %v762 = vpop.f32.mrf.mxu0
  %v763 = vpop.f32.mrf.mxu0
  %v764 = vadd.f32 %v57, %v763
  %v765 = vpop.f32.mrf.mxu0
  %766 = vdwg.mxu0
  %v767 = vsel %vm203, %v761, -inf
  %768 = vmax.xlane.f32.xlu0 %v767
  %v769 = vpop.xlane.xlu0 %768
  %v770 = vsel %vm203, %v764, -inf
  %771 = vmax.xlane.f32.xlu0 %v770
  %v772 = vpop.xlane.xlu0 %771
  %v773 = vsub.f32 %v761, %v769
  %v774 = vsub.f32 %v764, %v772
  %v775 = vmul.f32 %v773, 1.442695
  %v776 = vpow.pop %v775
  %v777 = vmul.f32 %v774, 1.442695
  %v778 = vpow.pop %v777
  %v779 = vsel %vm203, %v776, 0.0
  %780 = vadd.xlane.f32.xlu0 %v779
  %v781 = vpop.xlane.xlu0 %780
  %v782 = vsel %vm203, %v778, 0.0
  %783 = vadd.xlane.f32.xlu0 %v782
  %v784 = vpop.xlane.xlu0 %783
  %v785 = vrcp.pop %v781
  %v786 = vrcp.pop %v784
  %v787 = vmul.f32 %v776, %v785
  %v788 = vmul.f32 %v778, %v786
  %v789 = vpack.c.bf16 %v788, %v787
  %790 = vrot.lane.b32.xlu0 %v199, 80
  %v791 = vpop.permute.xlu0 %790
  %v794 = vsel %vm203, %v789, 0
  %796 = vmatprep.subr.bf16.mxu0 0
  %797 = vmatpush1.bf16.msra.mxu0 0
  %798 = vmatprep.subr.bf16.mxu0 0
  %799 = vmatpush1.bf16.msra.mxu0 0
  %800 = vmatprep.subr.bf16.mxu0 0
  %801 = vmatpush1.bf16.msra.mxu0 0
  %802 = vmatprep.subr.bf16.mxu0 0
  %803 = vmatpush1.bf16.msra.mxu0 0
  %804 = vmatprep.subr.bf16.mxu0 0
  %805 = vmatpush1.bf16.msra.mxu0 0
  %806 = vmatprep.subr.bf16.mxu0 0
  %807 = vmatpush1.bf16.msra.mxu0 0
  %808 = vmatprep.subr.bf16.mxu0 0
  %809 = vmatpush1.bf16.msra.mxu0 0
  %810 = vmatprep.subr.bf16.mxu0 0
  %811 = vmatpush1.bf16.msra.mxu0 %v791
  %812 = vmatprep.subr.bf16.mxu0 0
  %813 = vmatpush2.bf16.msra.mxu0 0
  %814 = vmatprep.subr.bf16.mxu0 0
  %815 = vmatpush2.bf16.msra.mxu0 0
  %816 = vmatprep.subr.bf16.mxu0 0
  %817 = vmatpush2.bf16.msra.mxu0 0
  %818 = vmatprep.subr.bf16.mxu0 0
  %819 = vmatpush2.bf16.msra.mxu0 0
  %820 = vmatprep.subr.bf16.mxu0 0
  %821 = vmatpush2.bf16.msra.mxu0 0
  %822 = vmatprep.subr.bf16.mxu0 0
  %823 = vmatpush2.bf16.msra.mxu0 0
  %824 = vmatprep.subr.bf16.mxu0 0
  %825 = vmatpush2.bf16.msra.mxu0 0
  %826 = vmatprep.subr.bf16.mxu0 0
  %827 = vmatpush2.bf16.msra.mxu0 0
  %828 = vmatprep.mubr.bf16.mxu0 0
  %829 = vmatmul.mubr.bf16.gmra.mxu0 %v794
  %v830 = vpop.f32.mrf.mxu0
  %v831 = vadd.f32 0.0, %v830
  %v832 = vpop.f32.mrf.mxu0
  %v833 = vpop.f32.mrf.mxu0
  %v834 = vadd.f32 0.0, %v833
  %v835 = vpop.f32.mrf.mxu0
  %836 = vdwg.mxu0
  %v837 = vpack.c.bf16 %v834, %v831
  %v840 = vunpack.c.l.b16 %v72
  %v841 = vunpack.c.l.b16 %v73
  %v842 = vpack.c.b16 %v841, %v840
  %v845 = vsel %vm203, %v837, 0
  %847 = vmatprep.subr.bf16.mxu0 0
  %848 = vmatpush1.bf16.msra.mxu0 0
  %849 = vmatprep.subr.bf16.mxu0 0
  %850 = vmatpush1.bf16.msra.mxu0 0
  %851 = vmatprep.subr.bf16.mxu0 0
  %852 = vmatpush1.bf16.msra.mxu0 0
  %853 = vmatprep.subr.bf16.mxu0 0
  %854 = vmatpush1.bf16.msra.mxu0 0
  %855 = vmatprep.subr.bf16.mxu0 0
  %856 = vmatpush1.bf16.msra.mxu0 0
  %857 = vmatprep.subr.bf16.mxu0 0
  %858 = vmatpush1.bf16.msra.mxu0 0
  %859 = vmatprep.subr.bf16.mxu0 0
  %860 = vmatpush1.bf16.msra.mxu0 0
  %861 = vmatprep.subr.bf16.mxu0 0
  %862 = vmatpush1.bf16.msra.mxu0 %v842
  %863 = vmatprep.subr.bf16.mxu0 0
  %864 = vmatpush2.bf16.msra.mxu0 0
  %865 = vmatprep.subr.bf16.mxu0 0
  %866 = vmatpush2.bf16.msra.mxu0 0
  %867 = vmatprep.subr.bf16.mxu0 0
  %868 = vmatpush2.bf16.msra.mxu0 0
  %869 = vmatprep.subr.bf16.mxu0 0
  %870 = vmatpush2.bf16.msra.mxu0 0
  %871 = vmatprep.subr.bf16.mxu0 0
  %872 = vmatpush2.bf16.msra.mxu0 0
  %873 = vmatprep.subr.bf16.mxu0 0
  %874 = vmatpush2.bf16.msra.mxu0 0
  %875 = vmatprep.subr.bf16.mxu0 0
  %876 = vmatpush2.bf16.msra.mxu0 0
  %877 = vmatprep.subr.bf16.mxu0 0
  %878 = vmatpush2.bf16.msra.mxu0 0
  %879 = vmatprep.mubr.bf16.mxu0 0
  %880 = vmatmul.mubr.bf16.gmra.mxu0 %v845
  %v881 = vpop.f32.mrf.mxu0
  %v882 = vadd.f32 0.0, %v881
  %v883 = vpop.f32.mrf.mxu0
  %v884 = vpop.f32.mrf.mxu0
  %v885 = vadd.f32 0.0, %v884
  %v886 = vpop.f32.mrf.mxu0
  %887 = vdwg.mxu0
  %v888 = vadd.f32 %v714, %v882
  %v889 = vadd.f32 %v715, %v885
  %v890 = vld [vmem:[%s5] sm:$0x1]
  %v892 = vlaneseq
  %v893 = vshrl.u32 %v892, 7
  %v894 = vsub.s32 0, %v893
  %v895 = vrot.slane %v890, %v894
  %v897 = vadd.f32 %v888, %v895
  %v898 = vadd.f32 %v889, %v895
  %v899 = vadd.f32 %v54, %v897
  %v900 = vadd.f32 %v55, %v898
  %v901 = vld [vmem:[%s6] sm:$0x1]
  %v902 = vld [vmem:[%s7] sm:$0x1]
  %v903 = vsel %vm151, %v899, 0.0
  %904 = vadd.xlane.f32.xlu0 %v903
  %v905 = vpop.xlane.xlu0 %904
  %v906 = vsel %vm151, %v900, 0.0
  %907 = vadd.xlane.f32.xlu0 %v906
  %v908 = vpop.xlane.xlu0 %907
  %v909 = vrcp.pop 64.0
  %v910 = vmul.f32 %v905, %v909
  %v911 = vmul.f32 %v908, %v909
  %v912 = vsub.f32 %v899, %v910
  %v913 = vsub.f32 %v900, %v911
  %v914 = vmul.f32 %v912, %v912
  %v915 = vmul.f32 %v913, %v913
  %v916 = vsel %vm151, %v914, 0.0
  %917 = vadd.xlane.f32.xlu0 %v916
  %v918 = vpop.xlane.xlu0 %917
  %v919 = vsel %vm151, %v915, 0.0
  %920 = vadd.xlane.f32.xlu0 %v919
  %v921 = vpop.xlane.xlu0 %920
  %v922 = vmul.f32 %v918, %v909
  %v923 = vmul.f32 %v921, %v909
  %v924 = vadd.f32 %v922, 1e-05
  %v925 = vadd.f32 %v923, 1e-05
  %v926 = vrsqrt.pop %v924
  %v927 = vrsqrt.pop %v925
  %v928 = vmul.f32 %v912, %v926
  %v929 = vmul.f32 %v913, %v927
  %v931 = vlaneseq
  %v932 = vshrl.u32 %v931, 7
  %v933 = vsub.s32 0, %v932
  %v934 = vrot.slane %v901, %v933
  %v936 = vmul.f32 %v928, %v934
  %v937 = vmul.f32 %v929, %v934
  %v939 = vlaneseq
  %v940 = vshrl.u32 %v939, 7
  %v941 = vsub.s32 0, %v940
  %v942 = vrot.slane %v902, %v941
  %v944 = vadd.f32 %v936, %v942
  %v945 = vadd.f32 %v937, %v942
  %v946 = vpack.c.bf16 %v945, %v944
  %v947 = vld [vmem:[%s9] sm:$0x1]
  %v949 = vlaneseq
  %v950 = vshrl.u32 %v949, 7
  %v951 = vsub.s32 0, %v950
  %v952 = vrot.slane %v947, %v951
  %v962 = vunpack.c.l.b16 %v74
  %v963 = vunpack.c.l.b16 %v75
  %v964 = vunpack.c.l.b16 %v76
  %v965 = vunpack.c.l.b16 %v77
  %v966 = vunpack.c.l.b16 %v78
  %v967 = vunpack.c.l.b16 %v79
  %v968 = vunpack.c.l.b16 %v80
  %v969 = vunpack.c.l.b16 %v81
  %v970 = vpack.c.b16 %v963, %v962
  %v971 = vpack.c.b16 %v965, %v964
  %v972 = vpack.c.b16 %v967, %v966
  %v973 = vpack.c.b16 %v969, %v968
  %v979 = vsel %vm151, %v946, 0
  %981 = vmatprep.subr.bf16.mxu0 0
  %982 = vmatpush1.bf16.msra.mxu0 0
  %983 = vmatprep.subr.bf16.mxu0 0
  %984 = vmatpush1.bf16.msra.mxu0 0
  %985 = vmatprep.subr.bf16.mxu0 0
  %986 = vmatpush1.bf16.msra.mxu0 0
  %987 = vmatprep.subr.bf16.mxu0 0
  %988 = vmatpush1.bf16.msra.mxu0 0
  %989 = vmatprep.subr.bf16.mxu0 0
  %990 = vmatpush1.bf16.msra.mxu0 %v973
  %991 = vmatprep.subr.bf16.mxu0 0
  %992 = vmatpush1.bf16.msra.mxu0 %v972
  %993 = vmatprep.subr.bf16.mxu0 0
  %994 = vmatpush1.bf16.msra.mxu0 %v971
  %995 = vmatprep.subr.bf16.mxu0 0
  %996 = vmatpush1.bf16.msra.mxu0 %v970
  %997 = vmatprep.subr.bf16.mxu0 0
  %998 = vmatpush2.bf16.msra.mxu0 0
  %999 = vmatprep.subr.bf16.mxu0 0
  %1000 = vmatpush2.bf16.msra.mxu0 0
  %1001 = vmatprep.subr.bf16.mxu0 0
  %1002 = vmatpush2.bf16.msra.mxu0 0
  %1003 = vmatprep.subr.bf16.mxu0 0
  %1004 = vmatpush2.bf16.msra.mxu0 0
  %1005 = vmatprep.subr.bf16.mxu0 0
  %1006 = vmatpush2.bf16.msra.mxu0 0
  %1007 = vmatprep.subr.bf16.mxu0 0
  %1008 = vmatpush2.bf16.msra.mxu0 0
  %1009 = vmatprep.subr.bf16.mxu0 0
  %1010 = vmatpush2.bf16.msra.mxu0 0
  %1011 = vmatprep.subr.bf16.mxu0 0
  %1012 = vmatpush2.bf16.msra.mxu0 0
  %1013 = vmatprep.mubr.bf16.mxu0 0
  %1014 = vmatmul.mubr.bf16.gmra.mxu0 %v979
  %v1015 = vpop.f32.mrf.mxu0
  %v1016 = vadd.f32 %v952, %v1015
  %v1017 = vpop.f32.mrf.mxu0
  %v1018 = vpop.f32.mrf.mxu0
  %v1019 = vadd.f32 %v952, %v1018
  %v1020 = vpop.f32.mrf.mxu0
  %1021 = vdwg.mxu0
  %v1022 = vmax.f32 %v1016, 0.0
  %v1023 = vmax.f32 %v1019, 0.0
  %v1024 = vpack.c.bf16 %v1023, %v1022
  %v1025 = vld [vmem:[%s11] sm:$0x1]
  %v1027 = vlaneseq
  %v1028 = vshrl.u32 %v1027, 7
  %v1029 = vsub.s32 0, %v1028
  %v1030 = vrot.slane %v1025, %v1029
  %v1048 = vunpack.c.l.b16 %v82
  %v1049 = vunpack.c.l.b16 %v83
  %v1050 = vunpack.c.l.b16 %v84
  %v1051 = vunpack.c.l.b16 %v85
  %v1052 = vunpack.c.l.b16 %v86
  %v1053 = vunpack.c.l.b16 %v87
  %v1054 = vunpack.c.l.b16 %v88
  %v1055 = vunpack.c.l.b16 %v89
  %v1056 = vunpack.c.l.b16 %v90
  %v1057 = vunpack.c.l.b16 %v91
  %v1058 = vunpack.c.l.b16 %v92
  %v1059 = vunpack.c.l.b16 %v93
  %v1060 = vunpack.c.l.b16 %v94
  %v1061 = vunpack.c.l.b16 %v95
  %v1062 = vunpack.c.l.b16 %v96
  %v1063 = vunpack.c.l.b16 %v97
  %v1064 = vpack.c.b16 %v1049, %v1048
  %v1065 = vpack.c.b16 %v1051, %v1050
  %v1066 = vpack.c.b16 %v1053, %v1052
  %v1067 = vpack.c.b16 %v1055, %v1054
  %v1068 = vpack.c.b16 %v1057, %v1056
  %v1069 = vpack.c.b16 %v1059, %v1058
  %v1070 = vpack.c.b16 %v1061, %v1060
  %v1071 = vpack.c.b16 %v1063, %v1062
  %1080 = vmatprep.subr.bf16.mxu0 0
  %1081 = vmatpush1.bf16.msra.mxu0 %v1071
  %1082 = vmatprep.subr.bf16.mxu0 0
  %1083 = vmatpush1.bf16.msra.mxu0 %v1070
  %1084 = vmatprep.subr.bf16.mxu0 0
  %1085 = vmatpush1.bf16.msra.mxu0 %v1069
  %1086 = vmatprep.subr.bf16.mxu0 0
  %1087 = vmatpush1.bf16.msra.mxu0 %v1068
  %1088 = vmatprep.subr.bf16.mxu0 0
  %1089 = vmatpush1.bf16.msra.mxu0 %v1067
  %1090 = vmatprep.subr.bf16.mxu0 0
  %1091 = vmatpush1.bf16.msra.mxu0 %v1066
  %1092 = vmatprep.subr.bf16.mxu0 0
  %1093 = vmatpush1.bf16.msra.mxu0 %v1065
  %1094 = vmatprep.subr.bf16.mxu0 0
  %1095 = vmatpush1.bf16.msra.mxu0 %v1064
  %1096 = vmatprep.subr.bf16.mxu0 0
  %1097 = vmatpush2.bf16.msra.mxu0 0
  %1098 = vmatprep.subr.bf16.mxu0 0
  %1099 = vmatpush2.bf16.msra.mxu0 0
  %1100 = vmatprep.subr.bf16.mxu0 0
  %1101 = vmatpush2.bf16.msra.mxu0 0
  %1102 = vmatprep.subr.bf16.mxu0 0
  %1103 = vmatpush2.bf16.msra.mxu0 0
  %1104 = vmatprep.subr.bf16.mxu0 0
  %1105 = vmatpush2.bf16.msra.mxu0 0
  %1106 = vmatprep.subr.bf16.mxu0 0
  %1107 = vmatpush2.bf16.msra.mxu0 0
  %1108 = vmatprep.subr.bf16.mxu0 0
  %1109 = vmatpush2.bf16.msra.mxu0 0
  %1110 = vmatprep.subr.bf16.mxu0 0
  %1111 = vmatpush2.bf16.msra.mxu0 0
  %1112 = vmatprep.mubr.bf16.mxu0 0
  %1113 = vmatmul.mubr.bf16.gmra.mxu0 %v1024
  %v1114 = vpop.f32.mrf.mxu0
  %v1115 = vadd.f32 %v1030, %v1114
  %v1116 = vpop.f32.mrf.mxu0
  %v1117 = vpop.f32.mrf.mxu0
  %v1118 = vadd.f32 %v1030, %v1117
  %v1119 = vpop.f32.mrf.mxu0
  %1120 = vdwg.mxu0
  %v1121 = vadd.f32 %v944, %v1115
  %v1122 = vadd.f32 %v945, %v1118
  %v1123 = vld [vmem:[%s12] sm:$0x1]
  %v1124 = vld [vmem:[%s13] sm:$0x1]
  %v1125 = vsel %vm151, %v1121, 0.0
  %1126 = vadd.xlane.f32.xlu0 %v1125
  %v1127 = vpop.xlane.xlu0 %1126
  %v1128 = vsel %vm151, %v1122, 0.0
  %1129 = vadd.xlane.f32.xlu0 %v1128
  %v1130 = vpop.xlane.xlu0 %1129
  %v1131 = vmul.f32 %v1127, %v909
  %v1132 = vmul.f32 %v1130, %v909
  %v1133 = vsub.f32 %v1121, %v1131
  %v1134 = vsub.f32 %v1122, %v1132
  %v1135 = vmul.f32 %v1133, %v1133
  %v1136 = vmul.f32 %v1134, %v1134
  %v1137 = vsel %vm151, %v1135, 0.0
  %1138 = vadd.xlane.f32.xlu0 %v1137
  %v1139 = vpop.xlane.xlu0 %1138
  %v1140 = vsel %vm151, %v1136, 0.0
  %1141 = vadd.xlane.f32.xlu0 %v1140
  %v1142 = vpop.xlane.xlu0 %1141
  %v1143 = vmul.f32 %v1139, %v909
  %v1144 = vmul.f32 %v1142, %v909
  %v1145 = vadd.f32 %v1143, 1e-05
  %v1146 = vadd.f32 %v1144, 1e-05
  %v1147 = vrsqrt.pop %v1145
  %v1148 = vrsqrt.pop %v1146
  %v1149 = vmul.f32 %v1133, %v1147
  %v1150 = vmul.f32 %v1134, %v1148
  %v1152 = vlaneseq
  %v1153 = vshrl.u32 %v1152, 7
  %v1154 = vsub.s32 0, %v1153
  %v1155 = vrot.slane %v1123, %v1154
  %v1157 = vmul.f32 %v1149, %v1155
  %v1158 = vmul.f32 %v1150, %v1155
  %v1160 = vlaneseq
  %v1161 = vshrl.u32 %v1160, 7
  %v1162 = vsub.s32 0, %v1161
  %v1163 = vrot.slane %v1124, %v1162
  %v1165 = vadd.f32 %v1157, %v1163
  %v1166 = vadd.f32 %v1158, %v1163
  %s1167 = scalar_lea.vmem %s2, 64
  %v1168 = vld [vmem:[%s1167] sm:$0xff]
  %v1169 = vld [vmem:[%s1167 + $0x8] sm:$0xff]
  %v1170 = vld [vmem:[%s1167 + $0x10] sm:$0xff]
  %v1171 = vld [vmem:[%s1167 + $0x18] sm:$0xff]
  %v1172 = vld [vmem:[%s1167 + $0x20] sm:$0xff]
  %v1173 = vld [vmem:[%s1167 + $0x28] sm:$0xff]
  %v1174 = vld [vmem:[%s1167 + $0x30] sm:$0xff]
  %v1175 = vld [vmem:[%s1167 + $0x38] sm:$0xff]
  %s1176 = scalar_lea.vmem %s4, 32
  %v1177 = vld [vmem:[%s1176] sm:$0xf]
  %v1178 = vld [vmem:[%s1176 + $0x4] sm:$0xf]
  %v1179 = vld [vmem:[%s1176 + $0x8] sm:$0xf]
  %v1180 = vld [vmem:[%s1176 + $0xc] sm:$0xf]
  %v1181 = vld [vmem:[%s1176 + $0x10] sm:$0xf]
  %v1182 = vld [vmem:[%s1176 + $0x14] sm:$0xf]
  %v1183 = vld [vmem:[%s1176 + $0x18] sm:$0xf]
  %v1184 = vld [vmem:[%s1176 + $0x1c] sm:$0xf]
  %s1185 = scalar_lea.vmem %s8, 32
  %v1186 = vld [vmem:[%s1185] sm:$0xf]
  %v1187 = vld [vmem:[%s1185 + $0x4] sm:$0xf]
  %v1188 = vld [vmem:[%s1185 + $0x8] sm:$0xf]
  %v1189 = vld [vmem:[%s1185 + $0xc] sm:$0xf]
  %v1190 = vld [vmem:[%s1185 + $0x10] sm:$0xf]
  %v1191 = vld [vmem:[%s1185 + $0x14] sm:$0xf]
  %v1192 = vld [vmem:[%s1185 + $0x18] sm:$0xf]
  %v1193 = vld [vmem:[%s1185 + $0x1c] sm:$0xf]
  %s1194 = scalar_lea.vmem %s10, 64
  %v1195 = vld [vmem:[%s1194] sm:$0xf]
  %v1196 = vld [vmem:[%s1194 + $0x4] sm:$0xf]
  %v1197 = vld [vmem:[%s1194 + $0x8] sm:$0xf]
  %v1198 = vld [vmem:[%s1194 + $0xc] sm:$0xf]
  %v1199 = vld [vmem:[%s1194 + $0x10] sm:$0xf]
  %v1200 = vld [vmem:[%s1194 + $0x14] sm:$0xf]
  %v1201 = vld [vmem:[%s1194 + $0x18] sm:$0xf]
  %v1202 = vld [vmem:[%s1194 + $0x1c] sm:$0xf]
  %v1203 = vld [vmem:[%s1194 + $0x20] sm:$0xf]
  %v1204 = vld [vmem:[%s1194 + $0x24] sm:$0xf]
  %v1205 = vld [vmem:[%s1194 + $0x28] sm:$0xf]
  %v1206 = vld [vmem:[%s1194 + $0x2c] sm:$0xf]
  %v1207 = vld [vmem:[%s1194 + $0x30] sm:$0xf]
  %v1208 = vld [vmem:[%s1194 + $0x34] sm:$0xf]
  %v1209 = vld [vmem:[%s1194 + $0x38] sm:$0xf]
  %v1210 = vld [vmem:[%s1194 + $0x3c] sm:$0xf]
  %v1211 = vpack.c.bf16 %v1166, %v1165
  %s1212 = scalar_lea.vmem %s3, 2
  %v1213 = vld [vmem:[%s1212] sm:$0x3]
  %v1215 = vlaneseq
  %v1216 = vshrl.u32 %v1215, 7
  %v1217 = vsub.s32 0, %v1216
  %v1218 = vrot.slane %v1213, %v1217
  %v1219 = vlaneseq
  %v1220 = vshrl.u32 %v1219, 7
  %v1221 = vsub.s32 1, %v1220
  %v1222 = vrot.slane %v1213, %v1221
  %v1233 = vunpack.c.l.b16 %v1168
  %v1234 = vunpack.c.h.b16 %v1168
  %v1235 = vunpack.c.l.b16 %v1169
  %v1236 = vunpack.c.h.b16 %v1169
  %v1237 = vunpack.c.l.b16 %v1170
  %v1238 = vunpack.c.h.b16 %v1170
  %v1239 = vunpack.c.l.b16 %v1171
  %v1240 = vunpack.c.h.b16 %v1171
  %v1241 = vunpack.c.l.b16 %v1172
  %v1242 = vunpack.c.h.b16 %v1172
  %v1243 = vunpack.c.l.b16 %v1173
  %v1244 = vunpack.c.h.b16 %v1173
  %v1245 = vunpack.c.l.b16 %v1174
  %v1246 = vunpack.c.h.b16 %v1174
  %v1247 = vunpack.c.l.b16 %v1175
  %v1248 = vunpack.c.h.b16 %v1175
  %v1249 = vpack.c.b16 %v1235, %v1233
  %v1250 = vpack.c.b16 %v1236, %v1234
  %v1251 = vpack.c.b16 %v1239, %v1237
  %v1252 = vpack.c.b16 %v1240, %v1238
  %v1253 = vpack.c.b16 %v1243, %v1241
  %v1254 = vpack.c.b16 %v1244, %v1242
  %v1255 = vpack.c.b16 %v1247, %v1245
  %v1256 = vpack.c.b16 %v1248, %v1246
  %v1266 = vsel %vm151, %v1211, 0
  %1268 = vmatprep.subr.bf16.mxu0 0
  %1269 = vmatpush1.bf16.msra.mxu0 0
  %1270 = vmatprep.subr.bf16.mxu0 0
  %1271 = vmatpush1.bf16.msra.mxu0 0
  %1272 = vmatprep.subr.bf16.mxu0 0
  %1273 = vmatpush1.bf16.msra.mxu0 0
  %1274 = vmatprep.subr.bf16.mxu0 0
  %1275 = vmatpush1.bf16.msra.mxu0 0
  %1276 = vmatprep.subr.bf16.mxu0 %v1256
  %1277 = vmatpush1.bf16.msra.mxu0 %v1255
  %1278 = vmatprep.subr.bf16.mxu0 %v1254
  %1279 = vmatpush1.bf16.msra.mxu0 %v1253
  %1280 = vmatprep.subr.bf16.mxu0 %v1252
  %1281 = vmatpush1.bf16.msra.mxu0 %v1251
  %1282 = vmatprep.subr.bf16.mxu0 %v1250
  %1283 = vmatpush1.bf16.msra.mxu0 %v1249
  %1284 = vmatprep.subr.bf16.mxu0 0
  %1285 = vmatpush2.bf16.msra.mxu0 0
  %1286 = vmatprep.subr.bf16.mxu0 0
  %1287 = vmatpush2.bf16.msra.mxu0 0
  %1288 = vmatprep.subr.bf16.mxu0 0
  %1289 = vmatpush2.bf16.msra.mxu0 0
  %1290 = vmatprep.subr.bf16.mxu0 0
  %1291 = vmatpush2.bf16.msra.mxu0 0
  %1292 = vmatprep.subr.bf16.mxu0 0
  %1293 = vmatpush2.bf16.msra.mxu0 0
  %1294 = vmatprep.subr.bf16.mxu0 0
  %1295 = vmatpush2.bf16.msra.mxu0 0
  %1296 = vmatprep.subr.bf16.mxu0 0
  %1297 = vmatpush2.bf16.msra.mxu0 0
  %1298 = vmatprep.subr.bf16.mxu0 0
  %1299 = vmatpush2.bf16.msra.mxu0 0
  %1300 = vmatprep.mubr.bf16.mxu0 0
  %1301 = vmatmul.mubr.bf16.gmra.mxu0 %v1266
  %v1302 = vpop.f32.mrf.mxu0
  %v1303 = vadd.f32 %v1218, %v1302
  %v1304 = vpop.f32.mrf.mxu0
  %v1305 = vadd.f32 %v1222, %v1304
  %v1306 = vpop.f32.mrf.mxu0
  %v1307 = vadd.f32 %v1218, %v1306
  %v1308 = vpop.f32.mrf.mxu0
  %v1309 = vadd.f32 %v1222, %v1308
  %1310 = vdwg.mxu0
  %v1311 = vpack.c.bf16 %v1307, %v1303
  %v1312 = vpack.c.bf16 %v1309, %v1305
  %1314 = vrot.lane.b32.xlu0 %v1311, 64
  %v1315 = vpop.permute.xlu0 %1314
  %v1317 = vsel %vm203, %v1311, 0
  %v1320 = vsel %vm203, %v1315, 0
  %1322 = vmatprep.subr.bf16.mxu0 0
  %1323 = vmatpush1.bf16.xpose.msra.mxu0 0
  %1324 = vmatprep.subr.bf16.mxu0 0
  %1325 = vmatpush1.bf16.xpose.msra.mxu0 0
  %1326 = vmatprep.subr.bf16.mxu0 0
  %1327 = vmatpush1.bf16.xpose.msra.mxu0 0
  %1328 = vmatprep.subr.bf16.mxu0 0
  %1329 = vmatpush1.bf16.xpose.msra.mxu0 0
  %1330 = vmatprep.subr.bf16.mxu0 0
  %1331 = vmatpush1.bf16.xpose.msra.mxu0 0
  %1332 = vmatprep.subr.bf16.mxu0 0
  %1333 = vmatpush1.bf16.xpose.msra.mxu0 0
  %1334 = vmatprep.subr.bf16.mxu0 0
  %1335 = vmatpush1.bf16.xpose.msra.mxu0 0
  %1336 = vmatprep.subr.bf16.mxu0 0
  %1337 = vmatpush1.bf16.xpose.msra.mxu0 %v1320
  %1338 = vmatprep.subr.bf16.mxu0 0
  %1339 = vmatpush2.bf16.xpose.msra.mxu0 0
  %1340 = vmatprep.subr.bf16.mxu0 0
  %1341 = vmatpush2.bf16.xpose.msra.mxu0 0
  %1342 = vmatprep.subr.bf16.mxu0 0
  %1343 = vmatpush2.bf16.xpose.msra.mxu0 0
  %1344 = vmatprep.subr.bf16.mxu0 0
  %1345 = vmatpush2.bf16.xpose.msra.mxu0 0
  %1346 = vmatprep.subr.bf16.mxu0 0
  %1347 = vmatpush2.bf16.xpose.msra.mxu0 0
  %1348 = vmatprep.subr.bf16.mxu0 0
  %1349 = vmatpush2.bf16.xpose.msra.mxu0 0
  %1350 = vmatprep.subr.bf16.mxu0 0
  %1351 = vmatpush2.bf16.xpose.msra.mxu0 0
  %1352 = vmatprep.subr.bf16.mxu0 0
  %1353 = vmatpush2.bf16.xpose.msra.mxu0 0
  %1354 = vmatprep.mubr.bf16.mxu0 0
  %1355 = vmatmul.mubr.bf16.gmra.mxu0 %v1317
  %v1356 = vpop.f32.mrf.mxu0
  %v1357 = vadd.f32 %v56, %v1356
  %v1358 = vpop.f32.mrf.mxu0
  %v1359 = vpop.f32.mrf.mxu0
  %v1360 = vadd.f32 %v57, %v1359
  %v1361 = vpop.f32.mrf.mxu0
  %1362 = vdwg.mxu0
  %v1363 = vsel %vm203, %v1357, -inf
  %1364 = vmax.xlane.f32.xlu0 %v1363
  %v1365 = vpop.xlane.xlu0 %1364
  %v1366 = vsel %vm203, %v1360, -inf
  %1367 = vmax.xlane.f32.xlu0 %v1366
  %v1368 = vpop.xlane.xlu0 %1367
  %v1369 = vsub.f32 %v1357, %v1365
  %v1370 = vsub.f32 %v1360, %v1368
  %v1371 = vmul.f32 %v1369, 1.442695
  %v1372 = vpow.pop %v1371
  %v1373 = vmul.f32 %v1370, 1.442695
  %v1374 = vpow.pop %v1373
  %v1375 = vsel %vm203, %v1372, 0.0
  %1376 = vadd.xlane.f32.xlu0 %v1375
  %v1377 = vpop.xlane.xlu0 %1376
  %v1378 = vsel %vm203, %v1374, 0.0
  %1379 = vadd.xlane.f32.xlu0 %v1378
  %v1380 = vpop.xlane.xlu0 %1379
  %v1381 = vrcp.pop %v1377
  %v1382 = vrcp.pop %v1380
  %v1383 = vmul.f32 %v1372, %v1381
  %v1384 = vmul.f32 %v1374, %v1382
  %v1385 = vpack.c.bf16 %v1384, %v1383
  %v1387 = vsel %vm203, %v1385, 0
  %1389 = vmatprep.subr.bf16.mxu0 0
  %1390 = vmatpush1.bf16.msra.mxu0 0
  %1391 = vmatprep.subr.bf16.mxu0 0
  %1392 = vmatpush1.bf16.msra.mxu0 0
  %1393 = vmatprep.subr.bf16.mxu0 0
  %1394 = vmatpush1.bf16.msra.mxu0 0
  %1395 = vmatprep.subr.bf16.mxu0 0
  %1396 = vmatpush1.bf16.msra.mxu0 0
  %1397 = vmatprep.subr.bf16.mxu0 0
  %1398 = vmatpush1.bf16.msra.mxu0 0
  %1399 = vmatprep.subr.bf16.mxu0 0
  %1400 = vmatpush1.bf16.msra.mxu0 0
  %1401 = vmatprep.subr.bf16.mxu0 0
  %1402 = vmatpush1.bf16.msra.mxu0 0
  %1403 = vmatprep.subr.bf16.mxu0 0
  %1404 = vmatpush1.bf16.msra.mxu0 %v1312
  %1405 = vmatprep.subr.bf16.mxu0 0
  %1406 = vmatpush2.bf16.msra.mxu0 0
  %1407 = vmatprep.subr.bf16.mxu0 0
  %1408 = vmatpush2.bf16.msra.mxu0 0
  %1409 = vmatprep.subr.bf16.mxu0 0
  %1410 = vmatpush2.bf16.msra.mxu0 0
  %1411 = vmatprep.subr.bf16.mxu0 0
  %1412 = vmatpush2.bf16.msra.mxu0 0
  %1413 = vmatprep.subr.bf16.mxu0 0
  %1414 = vmatpush2.bf16.msra.mxu0 0
  %1415 = vmatprep.subr.bf16.mxu0 0
  %1416 = vmatpush2.bf16.msra.mxu0 0
  %1417 = vmatprep.subr.bf16.mxu0 0
  %1418 = vmatpush2.bf16.msra.mxu0 0
  %1419 = vmatprep.subr.bf16.mxu0 0
  %1420 = vmatpush2.bf16.msra.mxu0 0
  %1421 = vmatprep.mubr.bf16.mxu0 0
  %1422 = vmatmul.mubr.bf16.gmra.mxu0 %v1387
  %v1423 = vpop.f32.mrf.mxu0
  %v1424 = vadd.f32 0.0, %v1423
  %v1425 = vpop.f32.mrf.mxu0
  %v1426 = vpop.f32.mrf.mxu0
  %v1427 = vadd.f32 0.0, %v1426
  %v1428 = vpop.f32.mrf.mxu0
  %1429 = vdwg.mxu0
  %v1430 = vpack.c.bf16 %v1427, %v1424
  %1431 = vrot.lane.b32.xlu0 %v1311, 112
  %v1432 = vpop.permute.xlu0 %1431
  %1433 = vrot.lane.b32.xlu0 %v1311, 48
  %v1434 = vpop.permute.xlu0 %1433
  %v1436 = vsel %vm203, %v1432, 0
  %v1439 = vsel %vm203, %v1434, 0
  %1441 = vmatprep.subr.bf16.mxu0 0
  %1442 = vmatpush1.bf16.xpose.msra.mxu0 0
  %1443 = vmatprep.subr.bf16.mxu0 0
  %1444 = vmatpush1.bf16.xpose.msra.mxu0 0
  %1445 = vmatprep.subr.bf16.mxu0 0
  %1446 = vmatpush1.bf16.xpose.msra.mxu0 0
  %1447 = vmatprep.subr.bf16.mxu0 0
  %1448 = vmatpush1.bf16.xpose.msra.mxu0 0
  %1449 = vmatprep.subr.bf16.mxu0 0
  %1450 = vmatpush1.bf16.xpose.msra.mxu0 0
  %1451 = vmatprep.subr.bf16.mxu0 0
  %1452 = vmatpush1.bf16.xpose.msra.mxu0 0
  %1453 = vmatprep.subr.bf16.mxu0 0
  %1454 = vmatpush1.bf16.xpose.msra.mxu0 0
  %1455 = vmatprep.subr.bf16.mxu0 0
  %1456 = vmatpush1.bf16.xpose.msra.mxu0 %v1439
  %1457 = vmatprep.subr.bf16.mxu0 0
  %1458 = vmatpush2.bf16.xpose.msra.mxu0 0
  %1459 = vmatprep.subr.bf16.mxu0 0
  %1460 = vmatpush2.bf16.xpose.msra.mxu0 0
  %1461 = vmatprep.subr.bf16.mxu0 0
  %1462 = vmatpush2.bf16.xpose.msra.mxu0 0
  %1463 = vmatprep.subr.bf16.mxu0 0
  %1464 = vmatpush2.bf16.xpose.msra.mxu0 0
  %1465 = vmatprep.subr.bf16.mxu0 0
  %1466 = vmatpush2.bf16.xpose.msra.mxu0 0
  %1467 = vmatprep.subr.bf16.mxu0 0
  %1468 = vmatpush2.bf16.xpose.msra.mxu0 0
  %1469 = vmatprep.subr.bf16.mxu0 0
  %1470 = vmatpush2.bf16.xpose.msra.mxu0 0
  %1471 = vmatprep.subr.bf16.mxu0 0
  %1472 = vmatpush2.bf16.xpose.msra.mxu0 0
  %1473 = vmatprep.mubr.bf16.mxu0 0
  %1474 = vmatmul.mubr.bf16.gmra.mxu0 %v1436
  %v1475 = vpop.f32.mrf.mxu0
  %v1476 = vadd.f32 %v56, %v1475
  %v1477 = vpop.f32.mrf.mxu0
  %v1478 = vpop.f32.mrf.mxu0
  %v1479 = vadd.f32 %v57, %v1478
  %v1480 = vpop.f32.mrf.mxu0
  %1481 = vdwg.mxu0
  %v1482 = vsel %vm203, %v1476, -inf
  %1483 = vmax.xlane.f32.xlu0 %v1482
  %v1484 = vpop.xlane.xlu0 %1483
  %v1485 = vsel %vm203, %v1479, -inf
  %1486 = vmax.xlane.f32.xlu0 %v1485
  %v1487 = vpop.xlane.xlu0 %1486
  %v1488 = vsub.f32 %v1476, %v1484
  %v1489 = vsub.f32 %v1479, %v1487
  %v1490 = vmul.f32 %v1488, 1.442695
  %v1491 = vpow.pop %v1490
  %v1492 = vmul.f32 %v1489, 1.442695
  %v1493 = vpow.pop %v1492
  %v1494 = vsel %vm203, %v1491, 0.0
  %1495 = vadd.xlane.f32.xlu0 %v1494
  %v1496 = vpop.xlane.xlu0 %1495
  %v1497 = vsel %vm203, %v1493, 0.0
  %1498 = vadd.xlane.f32.xlu0 %v1497
  %v1499 = vpop.xlane.xlu0 %1498
  %v1500 = vrcp.pop %v1496
  %v1501 = vrcp.pop %v1499
  %v1502 = vmul.f32 %v1491, %v1500
  %v1503 = vmul.f32 %v1493, %v1501
  %v1504 = vpack.c.bf16 %v1503, %v1502
  %1506 = vrot.lane.b32.xlu0 %v1312, 112
  %v1507 = vpop.permute.xlu0 %1506
  %v1510 = vsel %vm203, %v1504, 0
  %1512 = vmatprep.subr.bf16.mxu0 0
  %1513 = vmatpush1.bf16.msra.mxu0 0
  %1514 = vmatprep.subr.bf16.mxu0 0
  %1515 = vmatpush1.bf16.msra.mxu0 0
  %1516 = vmatprep.subr.bf16.mxu0 0
  %1517 = vmatpush1.bf16.msra.mxu0 0
  %1518 = vmatprep.subr.bf16.mxu0 0
  %1519 = vmatpush1.bf16.msra.mxu0 0
  %1520 = vmatprep.subr.bf16.mxu0 0
  %1521 = vmatpush1.bf16.msra.mxu0 0
  %1522 = vmatprep.subr.bf16.mxu0 0
  %1523 = vmatpush1.bf16.msra.mxu0 0
  %1524 = vmatprep.subr.bf16.mxu0 0
  %1525 = vmatpush1.bf16.msra.mxu0 0
  %1526 = vmatprep.subr.bf16.mxu0 0
  %1527 = vmatpush1.bf16.msra.mxu0 %v1507
  %1528 = vmatprep.subr.bf16.mxu0 0
  %1529 = vmatpush2.bf16.msra.mxu0 0
  %1530 = vmatprep.subr.bf16.mxu0 0
  %1531 = vmatpush2.bf16.msra.mxu0 0
  %1532 = vmatprep.subr.bf16.mxu0 0
  %1533 = vmatpush2.bf16.msra.mxu0 0
  %1534 = vmatprep.subr.bf16.mxu0 0
  %1535 = vmatpush2.bf16.msra.mxu0 0
  %1536 = vmatprep.subr.bf16.mxu0 0
  %1537 = vmatpush2.bf16.msra.mxu0 0
  %1538 = vmatprep.subr.bf16.mxu0 0
  %1539 = vmatpush2.bf16.msra.mxu0 0
  %1540 = vmatprep.subr.bf16.mxu0 0
  %1541 = vmatpush2.bf16.msra.mxu0 0
  %1542 = vmatprep.subr.bf16.mxu0 0
  %1543 = vmatpush2.bf16.msra.mxu0 0
  %1544 = vmatprep.mubr.bf16.mxu0 0
  %1545 = vmatmul.mubr.bf16.gmra.mxu0 %v1510
  %v1546 = vpop.f32.mrf.mxu0
  %v1547 = vadd.f32 0.0, %v1546
  %v1548 = vpop.f32.mrf.mxu0
  %v1549 = vpop.f32.mrf.mxu0
  %v1550 = vadd.f32 0.0, %v1549
  %v1551 = vpop.f32.mrf.mxu0
  %1552 = vdwg.mxu0
  %v1553 = vpack.c.bf16 %v1550, %v1547
  %v1556 = vunpack.c.l.b16 %v1179
  %v1557 = vunpack.c.l.b16 %v1180
  %v1558 = vpack.c.b16 %v1557, %v1556
  %v1561 = vsel %vm203, %v1553, 0
  %1563 = vmatprep.subr.bf16.mxu0 0
  %1564 = vmatpush1.bf16.msra.mxu0 0
  %1565 = vmatprep.subr.bf16.mxu0 0
  %1566 = vmatpush1.bf16.msra.mxu0 0
  %1567 = vmatprep.subr.bf16.mxu0 0
  %1568 = vmatpush1.bf16.msra.mxu0 0
  %1569 = vmatprep.subr.bf16.mxu0 0
  %1570 = vmatpush1.bf16.msra.mxu0 0
  %1571 = vmatprep.subr.bf16.mxu0 0
  %1572 = vmatpush1.bf16.msra.mxu0 0
  %1573 = vmatprep.subr.bf16.mxu0 0
  %1574 = vmatpush1.bf16.msra.mxu0 0
  %1575 = vmatprep.subr.bf16.mxu0 0
  %1576 = vmatpush1.bf16.msra.mxu0 0
  %1577 = vmatprep.subr.bf16.mxu0 0
  %1578 = vmatpush1.bf16.msra.mxu0 %v1558
  %1579 = vmatprep.subr.bf16.mxu0 0
  %1580 = vmatpush2.bf16.msra.mxu0 0
  %1581 = vmatprep.subr.bf16.mxu0 0
  %1582 = vmatpush2.bf16.msra.mxu0 0
  %1583 = vmatprep.subr.bf16.mxu0 0
  %1584 = vmatpush2.bf16.msra.mxu0 0
  %1585 = vmatprep.subr.bf16.mxu0 0
  %1586 = vmatpush2.bf16.msra.mxu0 0
  %1587 = vmatprep.subr.bf16.mxu0 0
  %1588 = vmatpush2.bf16.msra.mxu0 0
  %1589 = vmatprep.subr.bf16.mxu0 0
  %1590 = vmatpush2.bf16.msra.mxu0 0
  %1591 = vmatprep.subr.bf16.mxu0 0
  %1592 = vmatpush2.bf16.msra.mxu0 0
  %1593 = vmatprep.subr.bf16.mxu0 0
  %1594 = vmatpush2.bf16.msra.mxu0 0
  %1595 = vmatprep.mubr.bf16.mxu0 0
  %1596 = vmatmul.mubr.bf16.gmra.mxu0 %v1561
  %v1597 = vpop.f32.mrf.mxu0
  %v1598 = vadd.f32 0.0, %v1597
  %v1599 = vpop.f32.mrf.mxu0
  %v1600 = vpop.f32.mrf.mxu0
  %v1601 = vadd.f32 0.0, %v1600
  %v1602 = vpop.f32.mrf.mxu0
  %1603 = vdwg.mxu0
  %v1606 = vunpack.c.l.b16 %v1177
  %v1607 = vunpack.c.l.b16 %v1178
  %v1608 = vpack.c.b16 %v1607, %v1606
  %v1611 = vsel %vm203, %v1430, 0
  %1613 = vmatprep.subr.bf16.mxu0 0
  %1614 = vmatpush1.bf16.msra.mxu0 0
  %1615 = vmatprep.subr.bf16.mxu0 0
  %1616 = vmatpush1.bf16.msra.mxu0 0
  %1617 = vmatprep.subr.bf16.mxu0 0
  %1618 = vmatpush1.bf16.msra.mxu0 0
  %1619 = vmatprep.subr.bf16.mxu0 0
  %1620 = vmatpush1.bf16.msra.mxu0 0
  %1621 = vmatprep.subr.bf16.mxu0 0
  %1622 = vmatpush1.bf16.msra.mxu0 0
  %1623 = vmatprep.subr.bf16.mxu0 0
  %1624 = vmatpush1.bf16.msra.mxu0 0
  %1625 = vmatprep.subr.bf16.mxu0 0
  %1626 = vmatpush1.bf16.msra.mxu0 0
  %1627 = vmatprep.subr.bf16.mxu0 0
  %1628 = vmatpush1.bf16.msra.mxu0 %v1608
  %1629 = vmatprep.subr.bf16.mxu0 0
  %1630 = vmatpush2.bf16.msra.mxu0 0
  %1631 = vmatprep.subr.bf16.mxu0 0
  %1632 = vmatpush2.bf16.msra.mxu0 0
  %1633 = vmatprep.subr.bf16.mxu0 0
  %1634 = vmatpush2.bf16.msra.mxu0 0
  %1635 = vmatprep.subr.bf16.mxu0 0
  %1636 = vmatpush2.bf16.msra.mxu0 0
  %1637 = vmatprep.subr.bf16.mxu0 0
  %1638 = vmatpush2.bf16.msra.mxu0 0
  %1639 = vmatprep.subr.bf16.mxu0 0
  %1640 = vmatpush2.bf16.msra.mxu0 0
  %1641 = vmatprep.subr.bf16.mxu0 0
  %1642 = vmatpush2.bf16.msra.mxu0 0
  %1643 = vmatprep.subr.bf16.mxu0 0
  %1644 = vmatpush2.bf16.msra.mxu0 0
  %1645 = vmatprep.mubr.bf16.mxu0 0
  %1646 = vmatmul.mubr.bf16.gmra.mxu0 %v1611
  %v1647 = vpop.f32.mrf.mxu0
  %v1648 = vadd.f32 %v1598, %v1647
  %v1649 = vpop.f32.mrf.mxu0
  %v1650 = vpop.f32.mrf.mxu0
  %v1651 = vadd.f32 %v1601, %v1650
  %v1652 = vpop.f32.mrf.mxu0
  %1653 = vdwg.mxu0
  %1654 = vrot.lane.b32.xlu0 %v1311, 96
  %v1655 = vpop.permute.xlu0 %1654
  %1656 = vrot.lane.b32.xlu0 %v1311, 32
  %v1657 = vpop.permute.xlu0 %1656
  %v1659 = vsel %vm203, %v1655, 0
  %v1662 = vsel %vm203, %v1657, 0
  %1664 = vmatprep.subr.bf16.mxu0 0
  %1665 = vmatpush1.bf16.xpose.msra.mxu0 0
  %1666 = vmatprep.subr.bf16.mxu0 0
  %1667 = vmatpush1.bf16.xpose.msra.mxu0 0
  %1668 = vmatprep.subr.bf16.mxu0 0
  %1669 = vmatpush1.bf16.xpose.msra.mxu0 0
  %1670 = vmatprep.subr.bf16.mxu0 0
  %1671 = vmatpush1.bf16.xpose.msra.mxu0 0
  %1672 = vmatprep.subr.bf16.mxu0 0
  %1673 = vmatpush1.bf16.xpose.msra.mxu0 0
  %1674 = vmatprep.subr.bf16.mxu0 0
  %1675 = vmatpush1.bf16.xpose.msra.mxu0 0
  %1676 = vmatprep.subr.bf16.mxu0 0
  %1677 = vmatpush1.bf16.xpose.msra.mxu0 0
  %1678 = vmatprep.subr.bf16.mxu0 0
  %1679 = vmatpush1.bf16.xpose.msra.mxu0 %v1662
  %1680 = vmatprep.subr.bf16.mxu0 0
  %1681 = vmatpush2.bf16.xpose.msra.mxu0 0
  %1682 = vmatprep.subr.bf16.mxu0 0
  %1683 = vmatpush2.bf16.xpose.msra.mxu0 0
  %1684 = vmatprep.subr.bf16.mxu0 0
  %1685 = vmatpush2.bf16.xpose.msra.mxu0 0
  %1686 = vmatprep.subr.bf16.mxu0 0
  %1687 = vmatpush2.bf16.xpose.msra.mxu0 0
  %1688 = vmatprep.subr.bf16.mxu0 0
  %1689 = vmatpush2.bf16.xpose.msra.mxu0 0
  %1690 = vmatprep.subr.bf16.mxu0 0
  %1691 = vmatpush2.bf16.xpose.msra.mxu0 0
  %1692 = vmatprep.subr.bf16.mxu0 0
  %1693 = vmatpush2.bf16.xpose.msra.mxu0 0
  %1694 = vmatprep.subr.bf16.mxu0 0
  %1695 = vmatpush2.bf16.xpose.msra.mxu0 0
  %1696 = vmatprep.mubr.bf16.mxu0 0
  %1697 = vmatmul.mubr.bf16.gmra.mxu0 %v1659
  %v1698 = vpop.f32.mrf.mxu0
  %v1699 = vadd.f32 %v56, %v1698
  %v1700 = vpop.f32.mrf.mxu0
  %v1701 = vpop.f32.mrf.mxu0
  %v1702 = vadd.f32 %v57, %v1701
  %v1703 = vpop.f32.mrf.mxu0
  %1704 = vdwg.mxu0
  %v1705 = vsel %vm203, %v1699, -inf
  %1706 = vmax.xlane.f32.xlu0 %v1705
  %v1707 = vpop.xlane.xlu0 %1706
  %v1708 = vsel %vm203, %v1702, -inf
  %1709 = vmax.xlane.f32.xlu0 %v1708
  %v1710 = vpop.xlane.xlu0 %1709
  %v1711 = vsub.f32 %v1699, %v1707
  %v1712 = vsub.f32 %v1702, %v1710
  %v1713 = vmul.f32 %v1711, 1.442695
  %v1714 = vpow.pop %v1713
  %v1715 = vmul.f32 %v1712, 1.442695
  %v1716 = vpow.pop %v1715
  %v1717 = vsel %vm203, %v1714, 0.0
  %1718 = vadd.xlane.f32.xlu0 %v1717
  %v1719 = vpop.xlane.xlu0 %1718
  %v1720 = vsel %vm203, %v1716, 0.0
  %1721 = vadd.xlane.f32.xlu0 %v1720
  %v1722 = vpop.xlane.xlu0 %1721
  %v1723 = vrcp.pop %v1719
  %v1724 = vrcp.pop %v1722
  %v1725 = vmul.f32 %v1714, %v1723
  %v1726 = vmul.f32 %v1716, %v1724
  %v1727 = vpack.c.bf16 %v1726, %v1725
  %1728 = vrot.lane.b32.xlu0 %v1312, 96
  %v1729 = vpop.permute.xlu0 %1728
  %v1732 = vsel %vm203, %v1727, 0
  %1734 = vmatprep.subr.bf16.mxu0 0
  %1735 = vmatpush1.bf16.msra.mxu0 0
  %1736 = vmatprep.subr.bf16.mxu0 0
  %1737 = vmatpush1.bf16.msra.mxu0 0
  %1738 = vmatprep.subr.bf16.mxu0 0
  %1739 = vmatpush1.bf16.msra.mxu0 0
  %1740 = vmatprep.subr.bf16.mxu0 0
  %1741 = vmatpush1.bf16.msra.mxu0 0
  %1742 = vmatprep.subr.bf16.mxu0 0
  %1743 = vmatpush1.bf16.msra.mxu0 0
  %1744 = vmatprep.subr.bf16.mxu0 0
  %1745 = vmatpush1.bf16.msra.mxu0 0
  %1746 = vmatprep.subr.bf16.mxu0 0
  %1747 = vmatpush1.bf16.msra.mxu0 0
  %1748 = vmatprep.subr.bf16.mxu0 0
  %1749 = vmatpush1.bf16.msra.mxu0 %v1729
  %1750 = vmatprep.subr.bf16.mxu0 0
  %1751 = vmatpush2.bf16.msra.mxu0 0
  %1752 = vmatprep.subr.bf16.mxu0 0
  %1753 = vmatpush2.bf16.msra.mxu0 0
  %1754 = vmatprep.subr.bf16.mxu0 0
  %1755 = vmatpush2.bf16.msra.mxu0 0
  %1756 = vmatprep.subr.bf16.mxu0 0
  %1757 = vmatpush2.bf16.msra.mxu0 0
  %1758 = vmatprep.subr.bf16.mxu0 0
  %1759 = vmatpush2.bf16.msra.mxu0 0
  %1760 = vmatprep.subr.bf16.mxu0 0
  %1761 = vmatpush2.bf16.msra.mxu0 0
  %1762 = vmatprep.subr.bf16.mxu0 0
  %1763 = vmatpush2.bf16.msra.mxu0 0
  %1764 = vmatprep.subr.bf16.mxu0 0
  %1765 = vmatpush2.bf16.msra.mxu0 0
  %1766 = vmatprep.mubr.bf16.mxu0 0
  %1767 = vmatmul.mubr.bf16.gmra.mxu0 %v1732
  %v1768 = vpop.f32.mrf.mxu0
  %v1769 = vadd.f32 0.0, %v1768
  %v1770 = vpop.f32.mrf.mxu0
  %v1771 = vpop.f32.mrf.mxu0
  %v1772 = vadd.f32 0.0, %v1771
  %v1773 = vpop.f32.mrf.mxu0
  %1774 = vdwg.mxu0
  %v1775 = vpack.c.bf16 %v1772, %v1769
  %v1778 = vunpack.c.l.b16 %v1181
  %v1779 = vunpack.c.l.b16 %v1182
  %v1780 = vpack.c.b16 %v1779, %v1778
  %v1783 = vsel %vm203, %v1775, 0
  %1785 = vmatprep.subr.bf16.mxu0 0
  %1786 = vmatpush1.bf16.msra.mxu0 0
  %1787 = vmatprep.subr.bf16.mxu0 0
  %1788 = vmatpush1.bf16.msra.mxu0 0
  %1789 = vmatprep.subr.bf16.mxu0 0
  %1790 = vmatpush1.bf16.msra.mxu0 0
  %1791 = vmatprep.subr.bf16.mxu0 0
  %1792 = vmatpush1.bf16.msra.mxu0 0
  %1793 = vmatprep.subr.bf16.mxu0 0
  %1794 = vmatpush1.bf16.msra.mxu0 0
  %1795 = vmatprep.subr.bf16.mxu0 0
  %1796 = vmatpush1.bf16.msra.mxu0 0
  %1797 = vmatprep.subr.bf16.mxu0 0
  %1798 = vmatpush1.bf16.msra.mxu0 0
  %1799 = vmatprep.subr.bf16.mxu0 0
  %1800 = vmatpush1.bf16.msra.mxu0 %v1780
  %1801 = vmatprep.subr.bf16.mxu0 0
  %1802 = vmatpush2.bf16.msra.mxu0 0
  %1803 = vmatprep.subr.bf16.mxu0 0
  %1804 = vmatpush2.bf16.msra.mxu0 0
  %1805 = vmatprep.subr.bf16.mxu0 0
  %1806 = vmatpush2.bf16.msra.mxu0 0
  %1807 = vmatprep.subr.bf16.mxu0 0
  %1808 = vmatpush2.bf16.msra.mxu0 0
  %1809 = vmatprep.subr.bf16.mxu0 0
  %1810 = vmatpush2.bf16.msra.mxu0 0
  %1811 = vmatprep.subr.bf16.mxu0 0
  %1812 = vmatpush2.bf16.msra.mxu0 0
  %1813 = vmatprep.subr.bf16.mxu0 0
  %1814 = vmatpush2.bf16.msra.mxu0 0
  %1815 = vmatprep.subr.bf16.mxu0 0
  %1816 = vmatpush2.bf16.msra.mxu0 0
  %1817 = vmatprep.mubr.bf16.mxu0 0
  %1818 = vmatmul.mubr.bf16.gmra.mxu0 %v1783
  %v1819 = vpop.f32.mrf.mxu0
  %v1820 = vadd.f32 0.0, %v1819
  %v1821 = vpop.f32.mrf.mxu0
  %v1822 = vpop.f32.mrf.mxu0
  %v1823 = vadd.f32 0.0, %v1822
  %v1824 = vpop.f32.mrf.mxu0
  %1825 = vdwg.mxu0
  %v1826 = vadd.f32 %v1648, %v1820
  %v1827 = vadd.f32 %v1651, %v1823
  %1828 = vrot.lane.b32.xlu0 %v1311, 80
  %v1829 = vpop.permute.xlu0 %1828
  %1830 = vrot.lane.b32.xlu0 %v1311, 16
  %v1831 = vpop.permute.xlu0 %1830
  %v1833 = vsel %vm203, %v1829, 0
  %v1836 = vsel %vm203, %v1831, 0
  %1838 = vmatprep.subr.bf16.mxu0 0
  %1839 = vmatpush1.bf16.xpose.msra.mxu0 0
  %1840 = vmatprep.subr.bf16.mxu0 0
  %1841 = vmatpush1.bf16.xpose.msra.mxu0 0
  %1842 = vmatprep.subr.bf16.mxu0 0
  %1843 = vmatpush1.bf16.xpose.msra.mxu0 0
  %1844 = vmatprep.subr.bf16.mxu0 0
  %1845 = vmatpush1.bf16.xpose.msra.mxu0 0
  %1846 = vmatprep.subr.bf16.mxu0 0
  %1847 = vmatpush1.bf16.xpose.msra.mxu0 0
  %1848 = vmatprep.subr.bf16.mxu0 0
  %1849 = vmatpush1.bf16.xpose.msra.mxu0 0
  %1850 = vmatprep.subr.bf16.mxu0 0
  %1851 = vmatpush1.bf16.xpose.msra.mxu0 0
  %1852 = vmatprep.subr.bf16.mxu0 0
  %1853 = vmatpush1.bf16.xpose.msra.mxu0 %v1836
  %1854 = vmatprep.subr.bf16.mxu0 0
  %1855 = vmatpush2.bf16.xpose.msra.mxu0 0
  %1856 = vmatprep.subr.bf16.mxu0 0
  %1857 = vmatpush2.bf16.xpose.msra.mxu0 0
  %1858 = vmatprep.subr.bf16.mxu0 0
  %1859 = vmatpush2.bf16.xpose.msra.mxu0 0
  %1860 = vmatprep.subr.bf16.mxu0 0
  %1861 = vmatpush2.bf16.xpose.msra.mxu0 0
  %1862 = vmatprep.subr.bf16.mxu0 0
  %1863 = vmatpush2.bf16.xpose.msra.mxu0 0
  %1864 = vmatprep.subr.bf16.mxu0 0
  %1865 = vmatpush2.bf16.xpose.msra.mxu0 0
  %1866 = vmatprep.subr.bf16.mxu0 0
  %1867 = vmatpush2.bf16.xpose.msra.mxu0 0
  %1868 = vmatprep.subr.bf16.mxu0 0
  %1869 = vmatpush2.bf16.xpose.msra.mxu0 0
  %1870 = vmatprep.mubr.bf16.mxu0 0
  %1871 = vmatmul.mubr.bf16.gmra.mxu0 %v1833
  %v1872 = vpop.f32.mrf.mxu0
  %v1873 = vadd.f32 %v56, %v1872
  %v1874 = vpop.f32.mrf.mxu0
  %v1875 = vpop.f32.mrf.mxu0
  %v1876 = vadd.f32 %v57, %v1875
  %v1877 = vpop.f32.mrf.mxu0
  %1878 = vdwg.mxu0
  %v1879 = vsel %vm203, %v1873, -inf
  %1880 = vmax.xlane.f32.xlu0 %v1879
  %v1881 = vpop.xlane.xlu0 %1880
  %v1882 = vsel %vm203, %v1876, -inf
  %1883 = vmax.xlane.f32.xlu0 %v1882
  %v1884 = vpop.xlane.xlu0 %1883
  %v1885 = vsub.f32 %v1873, %v1881
  %v1886 = vsub.f32 %v1876, %v1884
  %v1887 = vmul.f32 %v1885, 1.442695
  %v1888 = vpow.pop %v1887
  %v1889 = vmul.f32 %v1886, 1.442695
  %v1890 = vpow.pop %v1889
  %v1891 = vsel %vm203, %v1888, 0.0
  %1892 = vadd.xlane.f32.xlu0 %v1891
  %v1893 = vpop.xlane.xlu0 %1892
  %v1894 = vsel %vm203, %v1890, 0.0
  %1895 = vadd.xlane.f32.xlu0 %v1894
  %v1896 = vpop.xlane.xlu0 %1895
  %v1897 = vrcp.pop %v1893
  %v1898 = vrcp.pop %v1896
  %v1899 = vmul.f32 %v1888, %v1897
  %v1900 = vmul.f32 %v1890, %v1898
  %v1901 = vpack.c.bf16 %v1900, %v1899
  %1902 = vrot.lane.b32.xlu0 %v1312, 80
  %v1903 = vpop.permute.xlu0 %1902
  %v1906 = vsel %vm203, %v1901, 0
  %1908 = vmatprep.subr.bf16.mxu0 0
  %1909 = vmatpush1.bf16.msra.mxu0 0
  %1910 = vmatprep.subr.bf16.mxu0 0
  %1911 = vmatpush1.bf16.msra.mxu0 0
  %1912 = vmatprep.subr.bf16.mxu0 0
  %1913 = vmatpush1.bf16.msra.mxu0 0
  %1914 = vmatprep.subr.bf16.mxu0 0
  %1915 = vmatpush1.bf16.msra.mxu0 0
  %1916 = vmatprep.subr.bf16.mxu0 0
  %1917 = vmatpush1.bf16.msra.mxu0 0
  %1918 = vmatprep.subr.bf16.mxu0 0
  %1919 = vmatpush1.bf16.msra.mxu0 0
  %1920 = vmatprep.subr.bf16.mxu0 0
  %1921 = vmatpush1.bf16.msra.mxu0 0
  %1922 = vmatprep.subr.bf16.mxu0 0
  %1923 = vmatpush1.bf16.msra.mxu0 %v1903
  %1924 = vmatprep.subr.bf16.mxu0 0
  %1925 = vmatpush2.bf16.msra.mxu0 0
  %1926 = vmatprep.subr.bf16.mxu0 0
  %1927 = vmatpush2.bf16.msra.mxu0 0
  %1928 = vmatprep.subr.bf16.mxu0 0
  %1929 = vmatpush2.bf16.msra.mxu0 0
  %1930 = vmatprep.subr.bf16.mxu0 0
  %1931 = vmatpush2.bf16.msra.mxu0 0
  %1932 = vmatprep.subr.bf16.mxu0 0
  %1933 = vmatpush2.bf16.msra.mxu0 0
  %1934 = vmatprep.subr.bf16.mxu0 0
  %1935 = vmatpush2.bf16.msra.mxu0 0
  %1936 = vmatprep.subr.bf16.mxu0 0
  %1937 = vmatpush2.bf16.msra.mxu0 0
  %1938 = vmatprep.subr.bf16.mxu0 0
  %1939 = vmatpush2.bf16.msra.mxu0 0
  %1940 = vmatprep.mubr.bf16.mxu0 0
  %1941 = vmatmul.mubr.bf16.gmra.mxu0 %v1906
  %v1942 = vpop.f32.mrf.mxu0
  %v1943 = vadd.f32 0.0, %v1942
  %v1944 = vpop.f32.mrf.mxu0
  %v1945 = vpop.f32.mrf.mxu0
  %v1946 = vadd.f32 0.0, %v1945
  %v1947 = vpop.f32.mrf.mxu0
  %1948 = vdwg.mxu0
  %v1949 = vpack.c.bf16 %v1946, %v1943
  %v1952 = vunpack.c.l.b16 %v1183
  %v1953 = vunpack.c.l.b16 %v1184
  %v1954 = vpack.c.b16 %v1953, %v1952
  %v1957 = vsel %vm203, %v1949, 0
  %1959 = vmatprep.subr.bf16.mxu0 0
  %1960 = vmatpush1.bf16.msra.mxu0 0
  %1961 = vmatprep.subr.bf16.mxu0 0
  %1962 = vmatpush1.bf16.msra.mxu0 0
  %1963 = vmatprep.subr.bf16.mxu0 0
  %1964 = vmatpush1.bf16.msra.mxu0 0
  %1965 = vmatprep.subr.bf16.mxu0 0
  %1966 = vmatpush1.bf16.msra.mxu0 0
  %1967 = vmatprep.subr.bf16.mxu0 0
  %1968 = vmatpush1.bf16.msra.mxu0 0
  %1969 = vmatprep.subr.bf16.mxu0 0
  %1970 = vmatpush1.bf16.msra.mxu0 0
  %1971 = vmatprep.subr.bf16.mxu0 0
  %1972 = vmatpush1.bf16.msra.mxu0 0
  %1973 = vmatprep.subr.bf16.mxu0 0
  %1974 = vmatpush1.bf16.msra.mxu0 %v1954
  %1975 = vmatprep.subr.bf16.mxu0 0
  %1976 = vmatpush2.bf16.msra.mxu0 0
  %1977 = vmatprep.subr.bf16.mxu0 0
  %1978 = vmatpush2.bf16.msra.mxu0 0
  %1979 = vmatprep.subr.bf16.mxu0 0
  %1980 = vmatpush2.bf16.msra.mxu0 0
  %1981 = vmatprep.subr.bf16.mxu0 0
  %1982 = vmatpush2.bf16.msra.mxu0 0
  %1983 = vmatprep.subr.bf16.mxu0 0
  %1984 = vmatpush2.bf16.msra.mxu0 0
  %1985 = vmatprep.subr.bf16.mxu0 0
  %1986 = vmatpush2.bf16.msra.mxu0 0
  %1987 = vmatprep.subr.bf16.mxu0 0
  %1988 = vmatpush2.bf16.msra.mxu0 0
  %1989 = vmatprep.subr.bf16.mxu0 0
  %1990 = vmatpush2.bf16.msra.mxu0 0
  %1991 = vmatprep.mubr.bf16.mxu0 0
  %1992 = vmatmul.mubr.bf16.gmra.mxu0 %v1957
  %v1993 = vpop.f32.mrf.mxu0
  %v1994 = vadd.f32 0.0, %v1993
  %v1995 = vpop.f32.mrf.mxu0
  %v1996 = vpop.f32.mrf.mxu0
  %v1997 = vadd.f32 0.0, %v1996
  %v1998 = vpop.f32.mrf.mxu0
  %1999 = vdwg.mxu0
  %v2000 = vadd.f32 %v1826, %v1994
  %v2001 = vadd.f32 %v1827, %v1997
  %s2002 = scalar_lea.vmem %s5, 1
  %v2003 = vld [vmem:[%s2002] sm:$0x1]
  %v2005 = vlaneseq
  %v2006 = vshrl.u32 %v2005, 7
  %v2007 = vsub.s32 0, %v2006
  %v2008 = vrot.slane %v2003, %v2007
  %v2010 = vadd.f32 %v2000, %v2008
  %v2011 = vadd.f32 %v2001, %v2008
  %v2012 = vadd.f32 %v1165, %v2010
  %v2013 = vadd.f32 %v1166, %v2011
  %s2014 = scalar_lea.vmem %s6, 1
  %v2015 = vld [vmem:[%s2014] sm:$0x1]
  %s2016 = scalar_lea.vmem %s7, 1
  %v2017 = vld [vmem:[%s2016] sm:$0x1]
  %v2018 = vsel %vm151, %v2012, 0.0
  %2019 = vadd.xlane.f32.xlu0 %v2018
  %v2020 = vpop.xlane.xlu0 %2019
  %v2021 = vsel %vm151, %v2013, 0.0
  %2022 = vadd.xlane.f32.xlu0 %v2021
  %v2023 = vpop.xlane.xlu0 %2022
  %v2024 = vmul.f32 %v2020, %v909
  %v2025 = vmul.f32 %v2023, %v909
  %v2026 = vsub.f32 %v2012, %v2024
  %v2027 = vsub.f32 %v2013, %v2025
  %v2028 = vmul.f32 %v2026, %v2026
  %v2029 = vmul.f32 %v2027, %v2027
  %v2030 = vsel %vm151, %v2028, 0.0
  %2031 = vadd.xlane.f32.xlu0 %v2030
  %v2032 = vpop.xlane.xlu0 %2031
  %v2033 = vsel %vm151, %v2029, 0.0
  %2034 = vadd.xlane.f32.xlu0 %v2033
  %v2035 = vpop.xlane.xlu0 %2034
  %v2036 = vmul.f32 %v2032, %v909
  %v2037 = vmul.f32 %v2035, %v909
  %v2038 = vadd.f32 %v2036, 1e-05
  %v2039 = vadd.f32 %v2037, 1e-05
  %v2040 = vrsqrt.pop %v2038
  %v2041 = vrsqrt.pop %v2039
  %v2042 = vmul.f32 %v2026, %v2040
  %v2043 = vmul.f32 %v2027, %v2041
  %v2045 = vlaneseq
  %v2046 = vshrl.u32 %v2045, 7
  %v2047 = vsub.s32 0, %v2046
  %v2048 = vrot.slane %v2015, %v2047
  %v2050 = vmul.f32 %v2042, %v2048
  %v2051 = vmul.f32 %v2043, %v2048
  %v2053 = vlaneseq
  %v2054 = vshrl.u32 %v2053, 7
  %v2055 = vsub.s32 0, %v2054
  %v2056 = vrot.slane %v2017, %v2055
  %v2058 = vadd.f32 %v2050, %v2056
  %v2059 = vadd.f32 %v2051, %v2056
  %v2060 = vpack.c.bf16 %v2059, %v2058
  %s2061 = scalar_lea.vmem %s9, 1
  %v2062 = vld [vmem:[%s2061] sm:$0x1]
  %v2064 = vlaneseq
  %v2065 = vshrl.u32 %v2064, 7
  %v2066 = vsub.s32 0, %v2065
  %v2067 = vrot.slane %v2062, %v2066
  %v2077 = vunpack.c.l.b16 %v1186
  %v2078 = vunpack.c.l.b16 %v1187
  %v2079 = vunpack.c.l.b16 %v1188
  %v2080 = vunpack.c.l.b16 %v1189
  %v2081 = vunpack.c.l.b16 %v1190
  %v2082 = vunpack.c.l.b16 %v1191
  %v2083 = vunpack.c.l.b16 %v1192
  %v2084 = vunpack.c.l.b16 %v1193
  %v2085 = vpack.c.b16 %v2078, %v2077
  %v2086 = vpack.c.b16 %v2080, %v2079
  %v2087 = vpack.c.b16 %v2082, %v2081
  %v2088 = vpack.c.b16 %v2084, %v2083
  %v2094 = vsel %vm151, %v2060, 0
  %2096 = vmatprep.subr.bf16.mxu0 0
  %2097 = vmatpush1.bf16.msra.mxu0 0
  %2098 = vmatprep.subr.bf16.mxu0 0
  %2099 = vmatpush1.bf16.msra.mxu0 0
  %2100 = vmatprep.subr.bf16.mxu0 0
  %2101 = vmatpush1.bf16.msra.mxu0 0
  %2102 = vmatprep.subr.bf16.mxu0 0
  %2103 = vmatpush1.bf16.msra.mxu0 0
  %2104 = vmatprep.subr.bf16.mxu0 0
  %2105 = vmatpush1.bf16.msra.mxu0 %v2088
  %2106 = vmatprep.subr.bf16.mxu0 0
  %2107 = vmatpush1.bf16.msra.mxu0 %v2087
  %2108 = vmatprep.subr.bf16.mxu0 0
  %2109 = vmatpush1.bf16.msra.mxu0 %v2086
  %2110 = vmatprep.subr.bf16.mxu0 0
  %2111 = vmatpush1.bf16.msra.mxu0 %v2085
  %2112 = vmatprep.subr.bf16.mxu0 0
  %2113 = vmatpush2.bf16.msra.mxu0 0
  %2114 = vmatprep.subr.bf16.mxu0 0
  %2115 = vmatpush2.bf16.msra.mxu0 0
  %2116 = vmatprep.subr.bf16.mxu0 0
  %2117 = vmatpush2.bf16.msra.mxu0 0
  %2118 = vmatprep.subr.bf16.mxu0 0
  %2119 = vmatpush2.bf16.msra.mxu0 0
  %2120 = vmatprep.subr.bf16.mxu0 0
  %2121 = vmatpush2.bf16.msra.mxu0 0
  %2122 = vmatprep.subr.bf16.mxu0 0
  %2123 = vmatpush2.bf16.msra.mxu0 0
  %2124 = vmatprep.subr.bf16.mxu0 0
  %2125 = vmatpush2.bf16.msra.mxu0 0
  %2126 = vmatprep.subr.bf16.mxu0 0
  %2127 = vmatpush2.bf16.msra.mxu0 0
  %2128 = vmatprep.mubr.bf16.mxu0 0
  %2129 = vmatmul.mubr.bf16.gmra.mxu0 %v2094
  %v2130 = vpop.f32.mrf.mxu0
  %v2131 = vadd.f32 %v2067, %v2130
  %v2132 = vpop.f32.mrf.mxu0
  %v2133 = vpop.f32.mrf.mxu0
  %v2134 = vadd.f32 %v2067, %v2133
  %v2135 = vpop.f32.mrf.mxu0
  %2136 = vdwg.mxu0
  %v2137 = vmax.f32 %v2131, 0.0
  %v2138 = vmax.f32 %v2134, 0.0
  %v2139 = vpack.c.bf16 %v2138, %v2137
  %s2140 = scalar_lea.vmem %s11, 1
  %v2141 = vld [vmem:[%s2140] sm:$0x1]
  %v2143 = vlaneseq
  %v2144 = vshrl.u32 %v2143, 7
  %v2145 = vsub.s32 0, %v2144
  %v2146 = vrot.slane %v2141, %v2145
  %v2164 = vunpack.c.l.b16 %v1195
  %v2165 = vunpack.c.l.b16 %v1196
  %v2166 = vunpack.c.l.b16 %v1197
  %v2167 = vunpack.c.l.b16 %v1198
  %v2168 = vunpack.c.l.b16 %v1199
  %v2169 = vunpack.c.l.b16 %v1200
  %v2170 = vunpack.c.l.b16 %v1201
  %v2171 = vunpack.c.l.b16 %v1202
  %v2172 = vunpack.c.l.b16 %v1203
  %v2173 = vunpack.c.l.b16 %v1204
  %v2174 = vunpack.c.l.b16 %v1205
  %v2175 = vunpack.c.l.b16 %v1206
  %v2176 = vunpack.c.l.b16 %v1207
  %v2177 = vunpack.c.l.b16 %v1208
  %v2178 = vunpack.c.l.b16 %v1209
  %v2179 = vunpack.c.l.b16 %v1210
  %v2180 = vpack.c.b16 %v2165, %v2164
  %v2181 = vpack.c.b16 %v2167, %v2166
  %v2182 = vpack.c.b16 %v2169, %v2168
  %v2183 = vpack.c.b16 %v2171, %v2170
  %v2184 = vpack.c.b16 %v2173, %v2172
  %v2185 = vpack.c.b16 %v2175, %v2174
  %v2186 = vpack.c.b16 %v2177, %v2176
  %v2187 = vpack.c.b16 %v2179, %v2178
  %2196 = vmatprep.subr.bf16.mxu0 0
  %2197 = vmatpush1.bf16.msra.mxu0 %v2187
  %2198 = vmatprep.subr.bf16.mxu0 0
  %2199 = vmatpush1.bf16.msra.mxu0 %v2186
  %2200 = vmatprep.subr.bf16.mxu0 0
  %2201 = vmatpush1.bf16.msra.mxu0 %v2185
  %2202 = vmatprep.subr.bf16.mxu0 0
  %2203 = vmatpush1.bf16.msra.mxu0 %v2184
  %2204 = vmatprep.subr.bf16.mxu0 0
  %2205 = vmatpush1.bf16.msra.mxu0 %v2183
  %2206 = vmatprep.subr.bf16.mxu0 0
  %2207 = vmatpush1.bf16.msra.mxu0 %v2182
  %2208 = vmatprep.subr.bf16.mxu0 0
  %2209 = vmatpush1.bf16.msra.mxu0 %v2181
  %2210 = vmatprep.subr.bf16.mxu0 0
  %2211 = vmatpush1.bf16.msra.mxu0 %v2180
  %2212 = vmatprep.subr.bf16.mxu0 0
  %2213 = vmatpush2.bf16.msra.mxu0 0
  %2214 = vmatprep.subr.bf16.mxu0 0
  %2215 = vmatpush2.bf16.msra.mxu0 0
  %2216 = vmatprep.subr.bf16.mxu0 0
  %2217 = vmatpush2.bf16.msra.mxu0 0
  %2218 = vmatprep.subr.bf16.mxu0 0
  %2219 = vmatpush2.bf16.msra.mxu0 0
  %2220 = vmatprep.subr.bf16.mxu0 0
  %2221 = vmatpush2.bf16.msra.mxu0 0
  %2222 = vmatprep.subr.bf16.mxu0 0
  %2223 = vmatpush2.bf16.msra.mxu0 0
  %2224 = vmatprep.subr.bf16.mxu0 0
  %2225 = vmatpush2.bf16.msra.mxu0 0
  %2226 = vmatprep.subr.bf16.mxu0 0
  %2227 = vmatpush2.bf16.msra.mxu0 0
  %2228 = vmatprep.mubr.bf16.mxu0 0
  %2229 = vmatmul.mubr.bf16.gmra.mxu0 %v2139
  %v2230 = vpop.f32.mrf.mxu0
  %v2231 = vadd.f32 %v2146, %v2230
  %v2232 = vpop.f32.mrf.mxu0
  %v2233 = vpop.f32.mrf.mxu0
  %v2234 = vadd.f32 %v2146, %v2233
  %v2235 = vpop.f32.mrf.mxu0
  %2236 = vdwg.mxu0
  %v2237 = vadd.f32 %v2058, %v2231
  %v2238 = vadd.f32 %v2059, %v2234
  %s2239 = scalar_lea.vmem %s12, 1
  %v2240 = vld [vmem:[%s2239] sm:$0x1]
  %s2241 = scalar_lea.vmem %s13, 1
  %v2242 = vld [vmem:[%s2241] sm:$0x1]
  %v2243 = vsel %vm151, %v2237, 0.0
  %2244 = vadd.xlane.f32.xlu0 %v2243
  %v2245 = vpop.xlane.xlu0 %2244
  %v2246 = vsel %vm151, %v2238, 0.0
  %2247 = vadd.xlane.f32.xlu0 %v2246
  %v2248 = vpop.xlane.xlu0 %2247
  %v2249 = vmul.f32 %v2245, %v909
  %v2250 = vmul.f32 %v2248, %v909
  %v2251 = vsub.f32 %v2237, %v2249
  %v2252 = vsub.f32 %v2238, %v2250
  %v2253 = vmul.f32 %v2251, %v2251
  %v2254 = vmul.f32 %v2252, %v2252
  %v2255 = vsel %vm151, %v2253, 0.0
  %2256 = vadd.xlane.f32.xlu0 %v2255
  %v2257 = vpop.xlane.xlu0 %2256
  %v2258 = vsel %vm151, %v2254, 0.0
  %2259 = vadd.xlane.f32.xlu0 %v2258
  %v2260 = vpop.xlane.xlu0 %2259
  %v2261 = vmul.f32 %v2257, %v909
  %v2262 = vmul.f32 %v2260, %v909
  %v2263 = vadd.f32 %v2261, 1e-05
  %v2264 = vadd.f32 %v2262, 1e-05
  %v2265 = vrsqrt.pop %v2263
  %v2266 = vrsqrt.pop %v2264
  %v2267 = vmul.f32 %v2251, %v2265
  %v2268 = vmul.f32 %v2252, %v2266
  %v2270 = vlaneseq
  %v2271 = vshrl.u32 %v2270, 7
  %v2272 = vsub.s32 0, %v2271
  %v2273 = vrot.slane %v2240, %v2272
  %v2275 = vmul.f32 %v2267, %v2273
  %v2276 = vmul.f32 %v2268, %v2273
  %v2278 = vlaneseq
  %v2279 = vshrl.u32 %v2278, 7
  %v2280 = vsub.s32 0, %v2279
  %v2281 = vrot.slane %v2242, %v2280
  %v2283 = vadd.f32 %v2275, %v2281
  %v2284 = vadd.f32 %v2276, %v2281
  %v2285 = vpack.c.bf16 %v2284, %v2283
  %v2286 = vld [vmem:[%s14] sm:$0xff]
  %v2287 = vld [vmem:[%s14 + $0x8] sm:$0xff]
  %v2288 = vld [vmem:[%s14 + $0x10] sm:$0xff]
  %v2289 = vld [vmem:[%s14 + $0x18] sm:$0xff]
  %v2290 = vld [vmem:[%s14 + $0x20] sm:$0xff]
  %v2291 = vld [vmem:[%s14 + $0x28] sm:$0xff]
  %v2292 = vld [vmem:[%s14 + $0x30] sm:$0xff]
  %v2293 = vld [vmem:[%s14 + $0x38] sm:$0xff]
  %v2294 = vld [vmem:[%s15] sm:$0x3]
  %v2296 = vlaneseq
  %v2297 = vshrl.u32 %v2296, 7
  %v2298 = vsub.s32 0, %v2297
  %v2299 = vrot.slane %v2294, %v2298
  %v2300 = vlaneseq
  %v2301 = vshrl.u32 %v2300, 7
  %v2302 = vsub.s32 1, %v2301
  %v2303 = vrot.slane %v2294, %v2302
  %v2314 = vunpack.c.l.b16 %v2286
  %v2315 = vunpack.c.h.b16 %v2286
  %v2316 = vunpack.c.l.b16 %v2287
  %v2317 = vunpack.c.h.b16 %v2287
  %v2318 = vunpack.c.l.b16 %v2288
  %v2319 = vunpack.c.h.b16 %v2288
  %v2320 = vunpack.c.l.b16 %v2289
  %v2321 = vunpack.c.h.b16 %v2289
  %v2322 = vunpack.c.l.b16 %v2290
  %v2323 = vunpack.c.h.b16 %v2290
  %v2324 = vunpack.c.l.b16 %v2291
  %v2325 = vunpack.c.h.b16 %v2291
  %v2326 = vunpack.c.l.b16 %v2292
  %v2327 = vunpack.c.h.b16 %v2292
  %v2328 = vunpack.c.l.b16 %v2293
  %v2329 = vunpack.c.h.b16 %v2293
  %v2330 = vpack.c.b16 %v2316, %v2314
  %v2331 = vpack.c.b16 %v2317, %v2315
  %v2332 = vpack.c.b16 %v2320, %v2318
  %v2333 = vpack.c.b16 %v2321, %v2319
  %v2334 = vpack.c.b16 %v2324, %v2322
  %v2335 = vpack.c.b16 %v2325, %v2323
  %v2336 = vpack.c.b16 %v2328, %v2326
  %v2337 = vpack.c.b16 %v2329, %v2327
  %v2347 = vsel %vm151, %v2285, 0
  %2349 = vmatprep.subr.bf16.mxu0 0
  %2350 = vmatpush1.bf16.msra.mxu0 0
  %2351 = vmatprep.subr.bf16.mxu0 0
  %2352 = vmatpush1.bf16.msra.mxu0 0
  %2353 = vmatprep.subr.bf16.mxu0 0
  %2354 = vmatpush1.bf16.msra.mxu0 0
  %2355 = vmatprep.subr.bf16.mxu0 0
  %2356 = vmatpush1.bf16.msra.mxu0 0
  %2357 = vmatprep.subr.bf16.mxu0 %v2337
  %2358 = vmatpush1.bf16.msra.mxu0 %v2336
  %2359 = vmatprep.subr.bf16.mxu0 %v2335
  %2360 = vmatpush1.bf16.msra.mxu0 %v2334
  %2361 = vmatprep.subr.bf16.mxu0 %v2333
  %2362 = vmatpush1.bf16.msra.mxu0 %v2332
  %2363 = vmatprep.subr.bf16.mxu0 %v2331
  %2364 = vmatpush1.bf16.msra.mxu0 %v2330
  %2365 = vmatprep.subr.bf16.mxu0 0
  %2366 = vmatpush2.bf16.msra.mxu0 0
  %2367 = vmatprep.subr.bf16.mxu0 0
  %2368 = vmatpush2.bf16.msra.mxu0 0
  %2369 = vmatprep.subr.bf16.mxu0 0
  %2370 = vmatpush2.bf16.msra.mxu0 0
  %2371 = vmatprep.subr.bf16.mxu0 0
  %2372 = vmatpush2.bf16.msra.mxu0 0
  %2373 = vmatprep.subr.bf16.mxu0 0
  %2374 = vmatpush2.bf16.msra.mxu0 0
  %2375 = vmatprep.subr.bf16.mxu0 0
  %2376 = vmatpush2.bf16.msra.mxu0 0
  %2377 = vmatprep.subr.bf16.mxu0 0
  %2378 = vmatpush2.bf16.msra.mxu0 0
  %2379 = vmatprep.subr.bf16.mxu0 0
  %2380 = vmatpush2.bf16.msra.mxu0 0
  %2381 = vmatprep.mubr.bf16.mxu0 0
  %2382 = vmatmul.mubr.bf16.gmra.mxu0 %v2347
  %v2383 = vpop.f32.mrf.mxu0
  %v2384 = vadd.f32 %v2299, %v2383
  %v2385 = vpop.f32.mrf.mxu0
  %v2386 = vadd.f32 %v2303, %v2385
  %v2387 = vpop.f32.mrf.mxu0
  %v2388 = vadd.f32 %v2299, %v2387
  %v2389 = vpop.f32.mrf.mxu0
  %v2390 = vadd.f32 %v2303, %v2389
  %2391 = vdwg.mxu0
  %2392 = vst [vmem:[%s16] sm:$0xff] %v2384
  %2393 = vst [vmem:[%s16 + $0x8] sm:$0xff] %v2386
  %2394 = vst [vmem:[%s16 + $0x10] sm:$0xff] %v2388
  %2395 = vst [vmem:[%s16 + $0x18] sm:$0xff] %v2390
  // Predicated region
  $region66: #{chess_model_forward.1} parent=0 // pred_check
    _
  $region67: #{chess_model_forward.1} parent=0 // pred_check_branch
    %2397 = sbr.rel (0) target = $region69
  $region68: #{chess_model_forward.1} parent=0 // pred_region
    _
  $region69: #{chess_model_forward.1} parent=0 // pred_fallthru
    _
  // Predicated region
  $region70: #{chess_model_forward.1} parent=0 // pred_check
    _
  $region71: #{chess_model_forward.1} parent=0 // pred_check_branch
    %2399 = sbr.rel (0) target = $region73
  $region72: #{chess_model_forward.1} parent=0 // pred_region
    _
  $region73: #{chess_model_forward.1} parent=0 // pred_fallthru
    _

</llo_original>
